<compile_context>
chip_gen: v6e
topology: v6e:2x2x1
jax: 0.10.0
libtpu: 0.0.40
codegen_flags: <defaults>
</compile_context>

<pallas_src>
import jax
import jax.numpy as jnp
from jax.experimental import pallas as pl
from jax.experimental.pallas import tpu as pltpu

NUM_BLOCKS = 4  # parameter blocks: patch-embed W, patch-embed b, head W, head b


# ---------------------------------------------------------------------------
# Fused kernel: hoisted in-VMEM task-vector composition + encoder forward
# ---------------------------------------------------------------------------
def _make_encoder_kernel(T, compute_dtype):
    def kernel(*refs):
        coef_ref = refs[0]                    # SMEM (T*NUM_BLOCKS,) flattened coef
        patches_ref = refs[1]                 # VMEM (b_tile*P, K)   streamed tile
        pool_ref = refs[2]                    # VMEM (b_tile, b_tile*P) pooling matrix
        w1_ref = refs[3]                      # VMEM (K, D)          base patch-embed W
        dw1_refs = refs[4:4 + T]              # T x VMEM (K, D)      deltas
        b1_ref = refs[4 + T]                  # VMEM (1, D)          composed bias (f32)
        w2_ref = refs[5 + T]                  # VMEM (D, O_pad)      base head W (padded)
        dw2_refs = refs[6 + T:6 + 2 * T]      # T x VMEM (D, O_pad)  deltas (padded)
        b2_ref = refs[6 + 2 * T]              # VMEM (1, O_pad)      composed bias (padded)
        out_ref = refs[7 + 2 * T]             # VMEM (b_tile, O_pad)
        w1c_ref = refs[8 + 2 * T]             # scratch (K, D)       composed W, compute dtype
        w2c_ref = refs[9 + 2 * T]             # scratch (D, O_pad)   composed W, compute dtype

        # ---- hoisted blockwise composition + cast: once per (core, outer) ----
        # (grid = (parallel outer, arbitrary inner); inner==0 fires on every
        #  core, so this is megacore-safe on v7x.  Deltas come straight from
        #  their single-buffered VMEM home; no HBM round-trip for the result.)
        @pl.when(pl.program_id(1) == 0)
        def _compose():
            w1 = w1_ref[...]
            w2 = w2_ref[...]
            for t in range(T):                # T small & static -> unrolled
                w1 = w1 + coef_ref[t * NUM_BLOCKS + 0] * dw1_refs[t][...]
                w2 = w2 + coef_ref[t * NUM_BLOCKS + 2] * dw2_refs[t][...]
            w1c_ref[...] = w1.astype(compute_dtype)
            w2c_ref[...] = w2.astype(compute_dtype)

        # ---- patch embed: single MXU matmul over all rows of this tile ----
        x = patches_ref[...]                                        # already compute_dtype
        feat = jnp.dot(x, w1c_ref[...],
                       preferred_element_type=jnp.float32)          # (rows, D) f32
        feat = jnp.maximum(feat + b1_ref[...], 0.0)                 # bias + ReLU

        # ---- mean-pool over the P patches of each image: one small MXU
        #      matmul with the constant block-diagonal (1/P) pooling matrix ----
        pooled = jnp.dot(pool_ref[...], feat,
                         preferred_element_type=jnp.float32)        # (b_tile, D) f32

        # ---- head matmul; lane-dense (128-padded) output store ----
        out = jnp.dot(pooled.astype(compute_dtype), w2c_ref[...],
                      preferred_element_type=jnp.float32) + b2_ref[...]
        out_ref[...] = out.astype(out_ref.dtype)

    return kernel


def _round_up(x, m):
    return (x + m - 1) // m * m


# ---------------------------------------------------------------------------
# Forward pass equivalent to WeightedImageEncoder.forward (blockwise=True)
# ---------------------------------------------------------------------------
def weighted_image_encoder_forward(x, params, dparams, coef, *, patch=8,
                                   b_tile=None, n_parallel=None,
                                   compute_dtype=jnp.bfloat16,
                                   vmem_limit_bytes=48 * 1024 * 1024):
    w1, b1, w2, b2 = params
    T = len(dparams)
    K, D = w1.shape
    O = w2.shape[1]
    O_pad = _round_up(O, 128)

    # --- tiny bias blocks: compose in plain JAX (launch overhead >> work) ---
    b1c = (b1 + sum(coef[t, 1] * dparams[t][1] for t in range(T))).astype(jnp.float32)
    b2c = (b2 + sum(coef[t, 3] * dparams[t][3] for t in range(T))).astype(jnp.float32)

    # --- pad head weight/deltas/bias so the output store is lane-dense ---
    pad = O_pad - O
    w2p = jnp.pad(w2, ((0, 0), (0, pad)))
    dw2p = [jnp.pad(dparams[t][2], ((0, 0), (0, pad))) for t in range(T)]
    b2p = jnp.pad(b2c, ((0, 0), (0, pad)))

    # --- patchify: NCHW -> (B*P, C*ph*pw); cast to the MXU operand dtype so
    #     the only per-step streaming DMA is halved on the bf16 path ---
    # TODO(synk): at real image sizes, fuse or move this transpose into the kernel.
    B, C, H, W = x.shape
    ph = pw = patch
    nh, nw = H // ph, W // pw
    P = nh * nw
    patches = x.reshape(B, C, nh, ph, nw, pw).transpose(0, 2, 4, 1, 3, 5)
    patches2d = patches.reshape(B * P, C * ph * pw).astype(compute_dtype)

    if b_tile is None:
        b_tile = B   # one grid step for small B; at real scale aim for b_tile*P >= ~512 rows
    assert B % b_tile == 0
    # (8,128) constraint: row blocks must be a multiple of 8 OR equal the full dim.
    assert b_tile == B or b_tile % 8 == 0
    assert (b_tile * P) == (B * P) or (b_tile * P) % 8 == 0

    n_tiles = B // b_tile
    if n_parallel is None:
        n_parallel = 2 if (n_tiles >= 2 and n_tiles % 2 == 0) else 1
    assert n_tiles % n_parallel == 0
    n_inner = n_tiles // n_parallel
    grid = (n_parallel, n_inner)   # (parallel across cores, arbitrary within core)

    # constant block-diagonal mean-pool matrix: row b has 1/P over image b's P rows
    pool_mat = jnp.repeat(jnp.eye(b_tile, dtype=jnp.float32), P, axis=1) / float(P)

    kernel = _make_encoder_kernel(T=T, compute_dtype=compute_dtype)

    tile_idx = lambda o, i: (o * n_inner + i, 0)
    # Unblocked whole-array VMEM residency: single-buffered, DMA'd once, never
    # re-fetched per grid step (constant weights/deltas/biases/pool matrix).
    vmem_full = pl.BlockSpec(memory_space=pltpu.MemorySpace.VMEM)

    in_specs = [pl.BlockSpec(memory_space=pltpu.MemorySpace.SMEM)]   # coef (scalars)
    in_specs += [pl.BlockSpec((b_tile * P, K), tile_idx)]            # patches (streamed)
    in_specs += [vmem_full] * (5 + 2 * T)                            # pool, w1, dw1*T, b1, w2, dw2*T, b2

    itemsize = jnp.dtype(compute_dtype).itemsize
    flops = (2 * B * P * K * D            # patch embed
             + 2 * B * P * b_tile * D     # pooling matmul (dense upper bound)
             + 2 * B * D * O_pad)         # head
    bytes_accessed = (B * P * K * itemsize
                      + (1 + T) * (K * D + D * O_pad) * 4
                      + (D + O_pad + b_tile * b_tile * P) * 4
                      + B * O_pad * 4)
    cost = pl.CostEstimate(flops=flops, transcendentals=0,
                           bytes_accessed=bytes_accessed)

    out_padded = pl.pallas_call(
        kernel,
        out_shape=jax.ShapeDtypeStruct((B, O_pad), jnp.float32),
        grid=grid,
        in_specs=in_specs,
        out_specs=pl.BlockSpec((b_tile, O_pad), tile_idx),
        scratch_shapes=[pltpu.VMEM((K, D), compute_dtype),      # composed patch-embed W
                        pltpu.VMEM((D, O_pad), compute_dtype)],  # composed head W
        compiler_params=pltpu.CompilerParams(
            dimension_semantics=("parallel", "arbitrary"),   # megacore-safe hoisting
            vmem_limit_bytes=vmem_limit_bytes),              # explicit budget (v7x-safe)
        cost_estimate=cost,
    )(
        coef.reshape(-1).astype(jnp.float32),
        patches2d,
        pool_mat,
        w1, *[dparams[t][0] for t in range(T)], b1c,
        w2p, *dw2p, b2p,
    )
    return out_padded[:, :O]


# ---------------------------------------------------------------------------
# Pure-JAX reference for validation
# ---------------------------------------------------------------------------
def reference_forward(x, params, dparams, coef, patch=8):
    T = len(dparams)
    new_params = []
    for i, base in enumerate(params):
        delta = sum(coef[t, i] * dparams[t][i] for t in range(T))
        new_params.append(base + delta)
    w1, b1, w2, b2 = new_params
    B, C, H, W = x.shape
    ph = pw = patch
    nh, nw = H // ph, W // pw
    patches = x.reshape(B, C, nh, ph, nw, pw).transpose(0, 2, 4, 1, 3, 5)
    patches = patches.reshape(B, nh * nw, C * ph * pw)
    feat = jnp.einsum("bpk,kd->bpd", patches, w1) + b1[None]
    feat = jnp.maximum(feat, 0.0)
    pooled = jnp.mean(feat, axis=1)
    return jnp.dot(pooled, w2) + b2


if __name__ == "__main__":
    key = jax.random.PRNGKey(0)
    B, C, H, W = 16, 4, 16, 16
    patch = 8
    K = C * patch * patch        # 256  flattened patch dim
    D = 128                      # embed dim
    O = 64                       # output (feature) dim
    T = 3                        # number of task vectors

    keys = jax.random.split(key, 4 + 4 * T + 1)

    # Base parameter blocks (len(self.params) == 4)
    params = [
        jax.random.normal(keys[0], (K, D), jnp.float32) * 0.02,   # patch-embed W
        jax.random.normal(keys[1], (1, D), jnp.float32) * 0.02,   # patch-embed b
        jax.random.normal(keys[2], (D, O), jnp.float32) * 0.02,   # head W
        jax.random.normal(keys[3], (1, O), jnp.float32) * 0.02,   # head b
    ]

    # Task-vector deltas: list (per task vector) of per-block deltas
    dparams = [
        [jax.random.normal(keys[4 + 4 * t + j], params[j].shape, jnp.float32) * 0.01
         for j in range(4)]
        for t in range(T)
    ]

    # Blockwise coefficients: (num_task_vectors, num_param_blocks)
    coef = (jnp.arange(T * len(params), dtype=jnp.float32)
            .reshape(T, len(params)) * 0.1 - 0.3)

    x = jax.random.normal(keys[-1], (B, C, H, W), jnp.float32)

    ref = reference_forward(x, params, dparams, coef, patch=patch)

    # 1) Default: whole batch in one grid step (grid (1,1)), f32 MXU operands.
    out1 = weighted_image_encoder_forward(x, params, dparams, coef, patch=patch,
                                          compute_dtype=jnp.float32)
    out1 = jax.block_until_ready(out1)
    assert out1.shape == (B, O)
    assert jnp.allclose(out1, ref, atol=1e-3, rtol=1e-3), "f32 single-tile mismatch"

    # 2) Tiled batch, 2-way 'parallel' outer axis (grid (2,1)) — exercises the
    #    megacore-safe per-core composition path, f32 operands.
    out2 = weighted_image_encoder_forward(x, params, dparams, coef, patch=patch,
                                          b_tile=8, n_parallel=2,
                                          compute_dtype=jnp.float32)
    out2 = jax.block_until_ready(out2)
    assert jnp.allclose(out2, ref, atol=1e-3, rtol=1e-3), "f32 tiled mismatch"

    # 3) Tiled batch, grid (1,2) — composition hoisted once and reused across
    #    inner steps; bf16 MXU-operand fast path (f32 accumulation).
    out3 = weighted_image_encoder_forward(x, params, dparams, coef, patch=patch,
                                          b_tile=8, n_parallel=1,
                                          compute_dtype=jnp.bfloat16)
    out3 = jax.block_until_ready(out3)
    assert jnp.allclose(out3, ref, atol=3e-2, rtol=3e-2), "bf16 tiled mismatch"

    print("KERNEL_OK")
</pallas_src>

<mosaic_0001>
module attributes {stable_mosaic.version = 11 : i64} {
  func.func @kernel(%arg0: i32, %arg1: i32, %arg2: memref<12xf32, #tpu.memory_space<smem>>, %arg3: memref<64x256xf32, #tpu.memory_space<vmem>>, %arg4: memref<16x64xf32, #tpu.memory_space<vmem>>, %arg5: memref<256x128xf32, #tpu.memory_space<vmem>>, %arg6: memref<256x128xf32, #tpu.memory_space<vmem>>, %arg7: memref<256x128xf32, #tpu.memory_space<vmem>>, %arg8: memref<256x128xf32, #tpu.memory_space<vmem>>, %arg9: memref<1x128xf32, #tpu.memory_space<vmem>>, %arg10: memref<128x128xf32, #tpu.memory_space<vmem>>, %arg11: memref<128x128xf32, #tpu.memory_space<vmem>>, %arg12: memref<128x128xf32, #tpu.memory_space<vmem>>, %arg13: memref<128x128xf32, #tpu.memory_space<vmem>>, %arg14: memref<1x128xf32, #tpu.memory_space<vmem>>, %arg15: memref<16x128xf32, #tpu.memory_space<vmem>>, %arg16: memref<256x128xf32, #tpu.memory_space<vmem>>, %arg17: memref<128x128xf32, #tpu.memory_space<vmem>>) attributes {dimension_semantics = [#tpu.dimension_semantics<parallel>, #tpu.dimension_semantics<arbitrary>], iteration_bounds = array<i64: 1, 1>, scalar_prefetch = 0 : i64, scratch_operands = 2 : i64, tpu.core_type = #tpu.core_type<tc>, window_params = [{transform_indices = @transform_0, window_bounds = array<i64: 12>}, {transform_indices = @transform_1, window_bounds = array<i64: 64, 256>}, {pipeline_mode = #tpu.pipeline_mode<synchronous>, transform_indices = @transform_2, window_bounds = array<i64: 16, 64>}, {pipeline_mode = #tpu.pipeline_mode<synchronous>, transform_indices = @transform_3, window_bounds = array<i64: 256, 128>}, {pipeline_mode = #tpu.pipeline_mode<synchronous>, transform_indices = @transform_4, window_bounds = array<i64: 256, 128>}, {pipeline_mode = #tpu.pipeline_mode<synchronous>, transform_indices = @transform_5, window_bounds = array<i64: 256, 128>}, {pipeline_mode = #tpu.pipeline_mode<synchronous>, transform_indices = @transform_6, window_bounds = array<i64: 256, 128>}, {pipeline_mode = #tpu.pipeline_mode<synchronous>, transform_indices = @transform_7, window_bounds = array<i64: 1, 128>}, {pipeline_mode = #tpu.pipeline_mode<synchronous>, transform_indices = @transform_8, window_bounds = array<i64: 128, 128>}, {pipeline_mode = #tpu.pipeline_mode<synchronous>, transform_indices = @transform_9, window_bounds = array<i64: 128, 128>}, {pipeline_mode = #tpu.pipeline_mode<synchronous>, transform_indices = @transform_10, window_bounds = array<i64: 128, 128>}, {pipeline_mode = #tpu.pipeline_mode<synchronous>, transform_indices = @transform_11, window_bounds = array<i64: 128, 128>}, {pipeline_mode = #tpu.pipeline_mode<synchronous>, transform_indices = @transform_12, window_bounds = array<i64: 1, 128>}, {transform_indices = @transform_13, window_bounds = array<i64: 16, 128>}]} {
    %c0_i32 = arith.constant 0 : i32
    %0 = arith.cmpi eq, %arg1, %c0_i32 : i32
    %1 = arith.extui %0 : i1 to i32
    %c0_i32_0 = arith.constant 0 : i32
    %2 = arith.cmpi ne, %1, %c0_i32_0 : i32
    scf.if %2 {
      %c0_17 = arith.constant 0 : index
      %c0_18 = arith.constant 0 : index
      %19 = vector.load %arg5[%c0_17, %c0_18] : memref<256x128xf32, #tpu.memory_space<vmem>>, vector<256x128xf32>
      %c0_19 = arith.constant 0 : index
      %c0_20 = arith.constant 0 : index
      %20 = vector.load %arg10[%c0_19, %c0_20] : memref<128x128xf32, #tpu.memory_space<vmem>>, vector<128x128xf32>
      %c0_21 = arith.constant 0 : index
      %21 = memref.load %arg2[%c0_21] : memref<12xf32, #tpu.memory_space<smem>>
      %c0_22 = arith.constant 0 : index
      %c0_23 = arith.constant 0 : index
      %22 = vector.load %arg6[%c0_22, %c0_23] : memref<256x128xf32, #tpu.memory_space<vmem>>, vector<256x128xf32>
      %23 = vector.broadcast %21 : f32 to vector<256x128xf32>
      %24 = arith.mulf %23, %22 : vector<256x128xf32>
      %25 = arith.addf %19, %24 : vector<256x128xf32>
      %c2 = arith.constant 2 : index
      %26 = memref.load %arg2[%c2] : memref<12xf32, #tpu.memory_space<smem>>
      %c0_24 = arith.constant 0 : index
      %c0_25 = arith.constant 0 : index
      %27 = vector.load %arg11[%c0_24, %c0_25] : memref<128x128xf32, #tpu.memory_space<vmem>>, vector<128x128xf32>
      %28 = vector.broadcast %26 : f32 to vector<128x128xf32>
      %29 = arith.mulf %28, %27 : vector<128x128xf32>
      %30 = arith.addf %20, %29 : vector<128x128xf32>
      %c4 = arith.constant 4 : index
      %31 = memref.load %arg2[%c4] : memref<12xf32, #tpu.memory_space<smem>>
      %c0_26 = arith.constant 0 : index
      %c0_27 = arith.constant 0 : index
      %32 = vector.load %arg7[%c0_26, %c0_27] : memref<256x128xf32, #tpu.memory_space<vmem>>, vector<256x128xf32>
      %33 = vector.broadcast %31 : f32 to vector<256x128xf32>
      %34 = arith.mulf %33, %32 : vector<256x128xf32>
      %35 = arith.addf %25, %34 : vector<256x128xf32>
      %c6 = arith.constant 6 : index
      %36 = memref.load %arg2[%c6] : memref<12xf32, #tpu.memory_space<smem>>
      %c0_28 = arith.constant 0 : index
      %c0_29 = arith.constant 0 : index
      %37 = vector.load %arg12[%c0_28, %c0_29] : memref<128x128xf32, #tpu.memory_space<vmem>>, vector<128x128xf32>
      %38 = vector.broadcast %36 : f32 to vector<128x128xf32>
      %39 = arith.mulf %38, %37 : vector<128x128xf32>
      %40 = arith.addf %30, %39 : vector<128x128xf32>
      %c8 = arith.constant 8 : index
      %41 = memref.load %arg2[%c8] : memref<12xf32, #tpu.memory_space<smem>>
      %c0_30 = arith.constant 0 : index
      %c0_31 = arith.constant 0 : index
      %42 = vector.load %arg8[%c0_30, %c0_31] : memref<256x128xf32, #tpu.memory_space<vmem>>, vector<256x128xf32>
      %43 = vector.broadcast %41 : f32 to vector<256x128xf32>
      %44 = arith.mulf %43, %42 : vector<256x128xf32>
      %45 = arith.addf %35, %44 : vector<256x128xf32>
      %c10 = arith.constant 10 : index
      %46 = memref.load %arg2[%c10] : memref<12xf32, #tpu.memory_space<smem>>
      %c0_32 = arith.constant 0 : index
      %c0_33 = arith.constant 0 : index
      %47 = vector.load %arg13[%c0_32, %c0_33] : memref<128x128xf32, #tpu.memory_space<vmem>>, vector<128x128xf32>
      %48 = vector.broadcast %46 : f32 to vector<128x128xf32>
      %49 = arith.mulf %48, %47 : vector<128x128xf32>
      %50 = arith.addf %40, %49 : vector<128x128xf32>
      %c0_34 = arith.constant 0 : index
      %c0_35 = arith.constant 0 : index
      %51 = vector.load %arg16[%c0_34, %c0_35] : memref<256x128xf32, #tpu.memory_space<vmem>>, vector<256x128xf32>
      tpu.vector_store %arg16[%c0_34, %c0_35], %45 {strides = array<i32>} : memref<256x128xf32, #tpu.memory_space<vmem>>, vector<256x128xf32>,
      %c0_36 = arith.constant 0 : index
      %c0_37 = arith.constant 0 : index
      %52 = vector.load %arg17[%c0_36, %c0_37] : memref<128x128xf32, #tpu.memory_space<vmem>>, vector<128x128xf32>
      tpu.vector_store %arg17[%c0_36, %c0_37], %50 {strides = array<i32>} : memref<128x128xf32, #tpu.memory_space<vmem>>, vector<128x128xf32>,
    } else {
    }
    %c0 = arith.constant 0 : index
    %c0_1 = arith.constant 0 : index
    %3 = vector.load %arg3[%c0, %c0_1] : memref<64x256xf32, #tpu.memory_space<vmem>>, vector<64x256xf32>
    %c0_2 = arith.constant 0 : index
    %c0_3 = arith.constant 0 : index
    %4 = vector.load %arg16[%c0_2, %c0_3] : memref<256x128xf32, #tpu.memory_space<vmem>>, vector<256x128xf32>
    %cst = arith.constant dense<0.000000e+00> : vector<64x128xf32>
    %5 = tpu.matmul %3, %4, %cst {dimension_numbers = #tpu.dot_dimension_numbers<[1], [0], [0], [1], [0, 0, 1, 1], [], []>} : vector<64x256xf32>, vector<256x128xf32>, vector<64x128xf32> -> vector<64x128xf32>
    %c0_4 = arith.constant 0 : index
    %c0_5 = arith.constant 0 : index
    %6 = vector.load %arg9[%c0_4, %c0_5] : memref<1x128xf32, #tpu.memory_space<vmem>>, vector<1x128xf32>
    %7 = vector.broadcast %6 : vector<1x128xf32> to vector<64x128xf32>
    %8 = arith.addf %5, %7 : vector<64x128xf32>
    %cst_6 = arith.constant 0.000000e+00 : f32
    %9 = vector.broadcast %cst_6 : f32 to vector<64x128xf32>
    %10 = arith.maximumf %8, %9 : vector<64x128xf32>
    %c0_7 = arith.constant 0 : index
    %c0_8 = arith.constant 0 : index
    %11 = vector.load %arg4[%c0_7, %c0_8] : memref<16x64xf32, #tpu.memory_space<vmem>>, vector<16x64xf32>
    %cst_9 = arith.constant dense<0.000000e+00> : vector<16x128xf32>
    %12 = tpu.matmul %11, %10, %cst_9 {dimension_numbers = #tpu.dot_dimension_numbers<[1], [0], [0], [1], [0, 0, 1, 1], [], []>} : vector<16x64xf32>, vector<64x128xf32>, vector<16x128xf32> -> vector<16x128xf32>
    %c0_10 = arith.constant 0 : index
    %c0_11 = arith.constant 0 : index
    %13 = vector.load %arg17[%c0_10, %c0_11] : memref<128x128xf32, #tpu.memory_space<vmem>>, vector<128x128xf32>
    %cst_12 = arith.constant dense<0.000000e+00> : vector<16x128xf32>
    %14 = tpu.matmul %12, %13, %cst_12 {dimension_numbers = #tpu.dot_dimension_numbers<[1], [0], [0], [1], [0, 0, 1, 1], [], []>} : vector<16x128xf32>, vector<128x128xf32>, vector<16x128xf32> -> vector<16x128xf32>
    %c0_13 = arith.constant 0 : index
    %c0_14 = arith.constant 0 : index
    %15 = vector.load %arg14[%c0_13, %c0_14] : memref<1x128xf32, #tpu.memory_space<vmem>>, vector<1x128xf32>
    %16 = vector.broadcast %15 : vector<1x128xf32> to vector<16x128xf32>
    %17 = arith.addf %14, %16 : vector<16x128xf32>
    %c0_15 = arith.constant 0 : index
    %c0_16 = arith.constant 0 : index
    %18 = vector.load %arg15[%c0_15, %c0_16] : memref<16x128xf32, #tpu.memory_space<vmem>>, vector<16x128xf32>
    tpu.vector_store %arg15[%c0_15, %c0_16], %17 {strides = array<i32>} : memref<16x128xf32, #tpu.memory_space<vmem>>, vector<16x128xf32>,
    return
  }
  func.func @transform_0(%arg0: i32, %arg1: i32) -> i32 {
    %c0_i32 = arith.constant 0 : i32
    %c0_i32_0 = arith.constant 0 : i32
    return %c0_i32 : i32
  }
  func.func @transform_1(%arg0: i32, %arg1: i32) -> (i32, i32) {
    %c1_i32 = arith.constant 1 : i32
    %0 = arith.muli %arg0, %c1_i32 : i32
    %1 = arith.addi %0, %arg1 : i32
    %c0_i32 = arith.constant 0 : i32
    %c0_i32_0 = arith.constant 0 : i32
    return %1, %c0_i32 : i32, i32
  }
  func.func @transform_2(%arg0: i32, %arg1: i32) -> (i32, i32) {
    %c0_i32 = arith.constant 0 : i32
    %c0_i32_0 = arith.constant 0 : i32
    %c0_i32_1 = arith.constant 0 : i32
    return %c0_i32, %c0_i32_0 : i32, i32
  }
  func.func @transform_3(%arg0: i32, %arg1: i32) -> (i32, i32) {
    %c0_i32 = arith.constant 0 : i32
    %c0_i32_0 = arith.constant 0 : i32
    %c0_i32_1 = arith.constant 0 : i32
    return %c0_i32, %c0_i32_0 : i32, i32
  }
  func.func @transform_4(%arg0: i32, %arg1: i32) -> (i32, i32) {
    %c0_i32 = arith.constant 0 : i32
    %c0_i32_0 = arith.constant 0 : i32
    %c0_i32_1 = arith.constant 0 : i32
    return %c0_i32, %c0_i32_0 : i32, i32
  }
  func.func @transform_5(%arg0: i32, %arg1: i32) -> (i32, i32) {
    %c0_i32 = arith.constant 0 : i32
    %c0_i32_0 = arith.constant 0 : i32
    %c0_i32_1 = arith.constant 0 : i32
    return %c0_i32, %c0_i32_0 : i32, i32
  }
  func.func @transform_6(%arg0: i32, %arg1: i32) -> (i32, i32) {
    %c0_i32 = arith.constant 0 : i32
    %c0_i32_0 = arith.constant 0 : i32
    %c0_i32_1 = arith.constant 0 : i32
    return %c0_i32, %c0_i32_0 : i32, i32
  }
  func.func @transform_7(%arg0: i32, %arg1: i32) -> (i32, i32) {
    %c0_i32 = arith.constant 0 : i32
    %c0_i32_0 = arith.constant 0 : i32
    %c0_i32_1 = arith.constant 0 : i32
    return %c0_i32, %c0_i32_0 : i32, i32
  }
  func.func @transform_8(%arg0: i32, %arg1: i32) -> (i32, i32) {
    %c0_i32 = arith.constant 0 : i32
    %c0_i32_0 = arith.constant 0 : i32
    %c0_i32_1 = arith.constant 0 : i32
    return %c0_i32, %c0_i32_0 : i32, i32
  }
  func.func @transform_9(%arg0: i32, %arg1: i32) -> (i32, i32) {
    %c0_i32 = arith.constant 0 : i32
    %c0_i32_0 = arith.constant 0 : i32
    %c0_i32_1 = arith.constant 0 : i32
    return %c0_i32, %c0_i32_0 : i32, i32
  }
  func.func @transform_10(%arg0: i32, %arg1: i32) -> (i32, i32) {
    %c0_i32 = arith.constant 0 : i32
    %c0_i32_0 = arith.constant 0 : i32
    %c0_i32_1 = arith.constant 0 : i32
    return %c0_i32, %c0_i32_0 : i32, i32
  }
  func.func @transform_11(%arg0: i32, %arg1: i32) -> (i32, i32) {
    %c0_i32 = arith.constant 0 : i32
    %c0_i32_0 = arith.constant 0 : i32
    %c0_i32_1 = arith.constant 0 : i32
    return %c0_i32, %c0_i32_0 : i32, i32
  }
  func.func @transform_12(%arg0: i32, %arg1: i32) -> (i32, i32) {
    %c0_i32 = arith.constant 0 : i32
    %c0_i32_0 = arith.constant 0 : i32
    %c0_i32_1 = arith.constant 0 : i32
    return %c0_i32, %c0_i32_0 : i32, i32
  }
  func.func @transform_13(%arg0: i32, %arg1: i32) -> (i32, i32) {
    %c1_i32 = arith.constant 1 : i32
    %0 = arith.muli %arg0, %c1_i32 : i32
    %1 = arith.addi %0, %arg1 : i32
    %c0_i32 = arith.constant 0 : i32
    %c0_i32_0 = arith.constant 0 : i32
    return %1, %c0_i32 : i32, i32
  }
}

</mosaic_0001>

<llo_original>
// kernel: tpu_custom_call.1
$region0: #{tpu_custom_call.1}
  #allocation0 [shape = 'u32[]', space=smem, size = 0x4, offset = 0x4, fixed_abs, tag = 'smem constant byte address 0x4 - core index']
  #allocation1 [shape = 'u32[144,128]{1,0:T(1,128)}', space=vmem, size = 0x12000, scoped, tag = 'internal scratch']
  #allocation2 [shape = 'f32[256,128]{1,0:T(8,128)}', space=vmem, size = 0x20000, scoped, tag = 'scratch operand']
  #allocation3 [shape = 'f32[128,128]{1,0:T(8,128)}', space=vmem, size = 0x10000, scoped, tag = 'scratch operand']
  %s0 = inlined_call_operand.hbm [shape: f32[12], index: 0, kind: input, shape index: {}]
  %s1 = inlined_call_operand.hbm [shape: f32[64,256], index: 1, kind: input, shape index: {}]
  %s2 = inlined_call_operand.hbm [shape: f32[16,64], index: 2, kind: input, shape index: {}]
  %s3 = inlined_call_operand.hbm [shape: f32[256,128], index: 3, kind: input, shape index: {}]
  %s4 = inlined_call_operand.hbm [shape: f32[256,128], index: 4, kind: input, shape index: {}]
  %s5 = inlined_call_operand.hbm [shape: f32[256,128], index: 5, kind: input, shape index: {}]
  %s6 = inlined_call_operand.hbm [shape: f32[256,128], index: 6, kind: input, shape index: {}]
  %s7 = inlined_call_operand.vmem [shape: f32[1,128], index: 7, kind: input, shape index: {}]
  %s8 = inlined_call_operand.hbm [shape: f32[128,128], index: 8, kind: input, shape index: {}]
  %s9 = inlined_call_operand.hbm [shape: f32[128,128], index: 9, kind: input, shape index: {}]
  %s10 = inlined_call_operand.hbm [shape: f32[128,128], index: 10, kind: input, shape index: {}]
  %s11 = inlined_call_operand.hbm [shape: f32[128,128], index: 11, kind: input, shape index: {}]
  %s12 = inlined_call_operand.vmem [shape: f32[1,128], index: 12, kind: input, shape index: {}]
  %s13 = inlined_call_operand.hbm [shape: f32[16,128], index: 13, kind: output, shape index: {}]
  %s14 = sld [smem:[#allocation0]]
  $region110: #{tpu_custom_call.1} parent=0
    _
  %s16 = ssub.s32 1, %s14
  %s17 = scalar_select 0, %s16, %s14
  $region1: #{tpu_custom_call.1} parent=0
    #allocation4 [shape = 'u8[512]{0}', space=smem, size = 0x200, scoped, tag = 'input window, operand 0, single buffered']
    #allocation5 [shape = 's32[1]{0}', space=sflag, size = 0x4, scoped, tag = 'scoped memory for tpu_custom_call.1']
    #allocation6 [shape = 's32[1]{0}', space=sflag, size = 0x4, scoped, tag = 'scoped memory for tpu_custom_call.1']
    #allocation7 [shape = 's32[1]{0}', space=sflag, size = 0x4, scoped, tag = 'scoped memory for tpu_custom_call.1']
    #allocation8 [shape = 'u8[65536]{0}', space=vmem, size = 0x10000, scoped, tag = 'input window, operand 1, single buffered']
    #allocation9 [shape = 'u8[8192]{0}', space=vmem, size = 0x2000, scoped, tag = 'input window, operand 2, single buffered']
    #allocation10 [shape = 's32[1]{0}', space=sflag, size = 0x4, scoped, tag = 'scoped memory for tpu_custom_call.1']
    #allocation11 [shape = 'u8[131072]{0}', space=vmem, size = 0x20000, scoped, tag = 'input window, operand 3, single buffered']
    #allocation12 [shape = 'u8[131072]{0}', space=vmem, size = 0x20000, scoped, tag = 'input window, operand 4, single buffered']
    #allocation13 [shape = 's32[1]{0}', space=sflag, size = 0x4, scoped, tag = 'scoped memory for tpu_custom_call.1']
    #allocation14 [shape = 'u8[131072]{0}', space=vmem, size = 0x20000, scoped, tag = 'input window, operand 5, single buffered']
    #allocation15 [shape = 'u8[131072]{0}', space=vmem, size = 0x20000, scoped, tag = 'input window, operand 6, single buffered']
    #allocation16 [shape = 's32[1]{0}', space=sflag, size = 0x4, scoped, tag = 'scoped memory for tpu_custom_call.1']
    #allocation17 [shape = 'u8[65536]{0}', space=vmem, size = 0x10000, scoped, tag = 'input window, operand 8, single buffered']
    #allocation18 [shape = 'u8[65536]{0}', space=vmem, size = 0x10000, scoped, tag = 'input window, operand 9, single buffered']
    #allocation19 [shape = 's32[1]{0}', space=sflag, size = 0x4, scoped, tag = 'scoped memory for tpu_custom_call.1']
    #allocation20 [shape = 'u8[65536]{0}', space=vmem, size = 0x10000, scoped, tag = 'input window, operand 10, single buffered']
    #allocation21 [shape = 'u8[65536]{0}', space=vmem, size = 0x10000, scoped, tag = 'input window, operand 11, single buffered']
    #allocation22 [shape = 's32[1]{0}', space=sflag, size = 0x4, scoped, tag = 'scoped memory for tpu_custom_call.1']
    #allocation23 [shape = 'u8[8192]{0}', space=vmem, size = 0x2000, scoped, tag = 'output window, operand 0, single buffered']
    %18 = vsyncpa [#allocation7], 0
    %19 = vsyncpa [#allocation5], 0
    %20 = vsyncpa [#allocation10], 0
    %21 = vsyncpa [#allocation13], 0
    %22 = vsyncpa [#allocation16], 0
    %23 = vsyncpa [#allocation19], 0
    %24 = vsyncpa [#allocation22], 0
    %25 = vsyncpa [#allocation6], 0
    // Predicated region
    $region2: #{tpu_custom_call.1} parent=1 // pred_check
      _
    $region3: #{tpu_custom_call.1} parent=1 // pred_check_branch
      %27 = sbr.rel (0) target = $region5
    $region4: #{tpu_custom_call.1} parent=1 // pred_region
      %s29 = ssub.s32 16, 16
      %30 = vsyncadd [#allocation7], %s29
      %33 = dma.hbm_to_smem %s0, 16, [#allocation4], [#allocation7]
    $region5: #{tpu_custom_call.1} parent=1 // pred_fallthru
      _
    // Predicated region
    $region6: #{tpu_custom_call.1} parent=1 // pred_check
      _
    $region7: #{tpu_custom_call.1} parent=1 // pred_check_branch
      %35 = sbr.rel (0) target = $region9
    $region8: #{tpu_custom_call.1} parent=1 // pred_region
      %s36 = sadd.s32 0, 0
      %s37 = smul.u32 8, %s36
      %s39 = ssub.s32 2048, 2048
      %40 = vsyncadd [#allocation5], %s39
      %s41 = smul.addr %s37, 2
      %s42 = smul.addr %s41, 128
      %s43 = scalar_lea.hbm %s1, %s42
      %s44 = sshll.u32 [#allocation8], 4
      %s45 = int_to_ptr.vmem [resolvable:$true] %s44
      %50 = dma.hbm_to_vmem [thread:$0]  %s43, 2048, %s45, [#allocation5], 256, 256, 16
    $region9: #{tpu_custom_call.1} parent=1 // pred_fallthru
      _
    // Predicated region
    $region10: #{tpu_custom_call.1} parent=1 // pred_check
      _
    $region11: #{tpu_custom_call.1} parent=1 // pred_check_branch
      %52 = sbr.rel (0) target = $region13
    $region12: #{tpu_custom_call.1} parent=1 // pred_region
      %s54 = ssub.s32 256, 256
      %55 = vsyncadd [#allocation10], %s54
      %s56 = sshll.u32 [#allocation9], 4
      %s57 = int_to_ptr.vmem [resolvable:$true] %s56
      %62 = dma.hbm_to_vmem [thread:$0]  %s2, 256, %s57, [#allocation10], 128, 128, 8
    $region13: #{tpu_custom_call.1} parent=1 // pred_fallthru
      _
    // Predicated region
    $region14: #{tpu_custom_call.1} parent=1 // pred_check
      _
    $region15: #{tpu_custom_call.1} parent=1 // pred_check_branch
      %64 = sbr.rel (0) target = $region17
    $region16: #{tpu_custom_call.1} parent=1 // pred_region
      %s66 = ssub.s32 4096, 4096
      %67 = vsyncadd [#allocation10], %s66
      %s68 = sshll.u32 [#allocation11], 4
      %s69 = int_to_ptr.vmem [resolvable:$true] %s68
      %74 = dma.hbm_to_vmem [thread:$0]  %s3, 4096, %s69, [#allocation10], 128, 128, 8
    $region17: #{tpu_custom_call.1} parent=1 // pred_fallthru
      _
    // Predicated region
    $region18: #{tpu_custom_call.1} parent=1 // pred_check
      _
    $region19: #{tpu_custom_call.1} parent=1 // pred_check_branch
      %76 = sbr.rel (0) target = $region21
    $region20: #{tpu_custom_call.1} parent=1 // pred_region
      %s78 = ssub.s32 4096, 4096
      %79 = vsyncadd [#allocation13], %s78
      %s80 = sshll.u32 [#allocation12], 4
      %s81 = int_to_ptr.vmem [resolvable:$true] %s80
      %86 = dma.hbm_to_vmem [thread:$0]  %s4, 4096, %s81, [#allocation13], 128, 128, 8
    $region21: #{tpu_custom_call.1} parent=1 // pred_fallthru
      _
    // Predicated region
    $region22: #{tpu_custom_call.1} parent=1 // pred_check
      _
    $region23: #{tpu_custom_call.1} parent=1 // pred_check_branch
      %88 = sbr.rel (0) target = $region25
    $region24: #{tpu_custom_call.1} parent=1 // pred_region
      %s90 = ssub.s32 4096, 4096
      %91 = vsyncadd [#allocation13], %s90
      %s92 = sshll.u32 [#allocation14], 4
      %s93 = int_to_ptr.vmem [resolvable:$true] %s92
      %98 = dma.hbm_to_vmem [thread:$0]  %s5, 4096, %s93, [#allocation13], 128, 128, 8
    $region25: #{tpu_custom_call.1} parent=1 // pred_fallthru
      _
    // Predicated region
    $region26: #{tpu_custom_call.1} parent=1 // pred_check
      _
    $region27: #{tpu_custom_call.1} parent=1 // pred_check_branch
      %100 = sbr.rel (0) target = $region29
    $region28: #{tpu_custom_call.1} parent=1 // pred_region
      %s102 = ssub.s32 4096, 4096
      %103 = vsyncadd [#allocation16], %s102
      %s104 = sshll.u32 [#allocation15], 4
      %s105 = int_to_ptr.vmem [resolvable:$true] %s104
      %110 = dma.hbm_to_vmem [thread:$0]  %s6, 4096, %s105, [#allocation16], 128, 128, 8
    $region29: #{tpu_custom_call.1} parent=1 // pred_fallthru
      _
    // Predicated region
    $region30: #{tpu_custom_call.1} parent=1 // pred_check
      _
    $region31: #{tpu_custom_call.1} parent=1 // pred_check_branch
      %112 = sbr.rel (0) target = $region33
    $region32: #{tpu_custom_call.1} parent=1 // pred_region
      _
    $region33: #{tpu_custom_call.1} parent=1 // pred_fallthru
      _
    // Predicated region
    $region34: #{tpu_custom_call.1} parent=1 // pred_check
      _
    $region35: #{tpu_custom_call.1} parent=1 // pred_check_branch
      %114 = sbr.rel (0) target = $region37
    $region36: #{tpu_custom_call.1} parent=1 // pred_region
      %s116 = ssub.s32 2048, 2048
      %117 = vsyncadd [#allocation16], %s116
      %s118 = sshll.u32 [#allocation17], 4
      %s119 = int_to_ptr.vmem [resolvable:$true] %s118
      %124 = dma.hbm_to_vmem [thread:$0]  %s8, 2048, %s119, [#allocation16], 128, 128, 8
    $region37: #{tpu_custom_call.1} parent=1 // pred_fallthru
      _
    // Predicated region
    $region38: #{tpu_custom_call.1} parent=1 // pred_check
      _
    $region39: #{tpu_custom_call.1} parent=1 // pred_check_branch
      %126 = sbr.rel (0) target = $region41
    $region40: #{tpu_custom_call.1} parent=1 // pred_region
      %s128 = ssub.s32 2048, 2048
      %129 = vsyncadd [#allocation19], %s128
      %s130 = sshll.u32 [#allocation18], 4
      %s131 = int_to_ptr.vmem [resolvable:$true] %s130
      %136 = dma.hbm_to_vmem [thread:$0]  %s9, 2048, %s131, [#allocation19], 128, 128, 8
    $region41: #{tpu_custom_call.1} parent=1 // pred_fallthru
      _
    // Predicated region
    $region42: #{tpu_custom_call.1} parent=1 // pred_check
      _
    $region43: #{tpu_custom_call.1} parent=1 // pred_check_branch
      %138 = sbr.rel (0) target = $region45
    $region44: #{tpu_custom_call.1} parent=1 // pred_region
      %s140 = ssub.s32 2048, 2048
      %141 = vsyncadd [#allocation19], %s140
      %s142 = sshll.u32 [#allocation20], 4
      %s143 = int_to_ptr.vmem [resolvable:$true] %s142
      %148 = dma.hbm_to_vmem [thread:$0]  %s10, 2048, %s143, [#allocation19], 128, 128, 8
    $region45: #{tpu_custom_call.1} parent=1 // pred_fallthru
      _
    // Predicated region
    $region46: #{tpu_custom_call.1} parent=1 // pred_check
      _
    $region47: #{tpu_custom_call.1} parent=1 // pred_check_branch
      %150 = sbr.rel (0) target = $region49
    $region48: #{tpu_custom_call.1} parent=1 // pred_region
      %s152 = ssub.s32 2048, 2048
      %153 = vsyncadd [#allocation22], %s152
      %s154 = sshll.u32 [#allocation21], 4
      %s155 = int_to_ptr.vmem [resolvable:$true] %s154
      %160 = dma.hbm_to_vmem [thread:$0]  %s11, 2048, %s155, [#allocation22], 128, 128, 8
    $region49: #{tpu_custom_call.1} parent=1 // pred_fallthru
      _
    // Predicated region
    $region50: #{tpu_custom_call.1} parent=1 // pred_check
      _
    $region51: #{tpu_custom_call.1} parent=1 // pred_check_branch
      %162 = sbr.rel (0) target = $region53
    $region52: #{tpu_custom_call.1} parent=1 // pred_region
      _
    $region53: #{tpu_custom_call.1} parent=1 // pred_fallthru
      _
    // Predicated region
    $region54: #{tpu_custom_call.1} parent=1 // pred_check
      _
    $region55: #{tpu_custom_call.1} parent=1 // pred_check_branch
      %164 = sbr.rel (0) target = $region57
    $region56: #{tpu_custom_call.1} parent=1 // pred_region
      %165 = dma.done [#allocation7], 16
    $region57: #{tpu_custom_call.1} parent=1 // pred_fallthru
      _
    // Predicated region
    $region58: #{tpu_custom_call.1} parent=1 // pred_check
      _
    $region59: #{tpu_custom_call.1} parent=1 // pred_check_branch
      %167 = sbr.rel (0) target = $region61
    $region60: #{tpu_custom_call.1} parent=1 // pred_region
      %168 = dma.done [#allocation5], 2048
    $region61: #{tpu_custom_call.1} parent=1 // pred_fallthru
      _
    // Predicated region
    $region62: #{tpu_custom_call.1} parent=1 // pred_check
      _
    $region63: #{tpu_custom_call.1} parent=1 // pred_check_branch
      %170 = sbr.rel (0) target = $region65
    $region64: #{tpu_custom_call.1} parent=1 // pred_region
      %171 = dma.done [#allocation10], 256
    $region65: #{tpu_custom_call.1} parent=1 // pred_fallthru
      _
    // Predicated region
    $region66: #{tpu_custom_call.1} parent=1 // pred_check
      _
    $region67: #{tpu_custom_call.1} parent=1 // pred_check_branch
      %173 = sbr.rel (0) target = $region69
    $region68: #{tpu_custom_call.1} parent=1 // pred_region
      %174 = dma.done [#allocation10], 4096
    $region69: #{tpu_custom_call.1} parent=1 // pred_fallthru
      _
    // Predicated region
    $region70: #{tpu_custom_call.1} parent=1 // pred_check
      _
    $region71: #{tpu_custom_call.1} parent=1 // pred_check_branch
      %176 = sbr.rel (0) target = $region73
    $region72: #{tpu_custom_call.1} parent=1 // pred_region
      %177 = dma.done [#allocation13], 4096
    $region73: #{tpu_custom_call.1} parent=1 // pred_fallthru
      _
    // Predicated region
    $region74: #{tpu_custom_call.1} parent=1 // pred_check
      _
    $region75: #{tpu_custom_call.1} parent=1 // pred_check_branch
      %179 = sbr.rel (0) target = $region77
    $region76: #{tpu_custom_call.1} parent=1 // pred_region
      %180 = dma.done [#allocation13], 4096
    $region77: #{tpu_custom_call.1} parent=1 // pred_fallthru
      _
    // Predicated region
    $region78: #{tpu_custom_call.1} parent=1 // pred_check
      _
    $region79: #{tpu_custom_call.1} parent=1 // pred_check_branch
      %182 = sbr.rel (0) target = $region81
    $region80: #{tpu_custom_call.1} parent=1 // pred_region
      %183 = dma.done [#allocation16], 4096
    $region81: #{tpu_custom_call.1} parent=1 // pred_fallthru
      _
    // Predicated region
    $region82: #{tpu_custom_call.1} parent=1 // pred_check
      _
    $region83: #{tpu_custom_call.1} parent=1 // pred_check_branch
      %185 = sbr.rel (0) target = $region85
    $region84: #{tpu_custom_call.1} parent=1 // pred_region
      %186 = dma.done [#allocation16], 2048
    $region85: #{tpu_custom_call.1} parent=1 // pred_fallthru
      _
    // Predicated region
    $region86: #{tpu_custom_call.1} parent=1 // pred_check
      _
    $region87: #{tpu_custom_call.1} parent=1 // pred_check_branch
      %188 = sbr.rel (0) target = $region89
    $region88: #{tpu_custom_call.1} parent=1 // pred_region
      %189 = dma.done [#allocation19], 2048
    $region89: #{tpu_custom_call.1} parent=1 // pred_fallthru
      _
    // Predicated region
    $region90: #{tpu_custom_call.1} parent=1 // pred_check
      _
    $region91: #{tpu_custom_call.1} parent=1 // pred_check_branch
      %191 = sbr.rel (0) target = $region93
    $region92: #{tpu_custom_call.1} parent=1 // pred_region
      %192 = dma.done [#allocation19], 2048
    $region93: #{tpu_custom_call.1} parent=1 // pred_fallthru
      _
    // Predicated region
    $region94: #{tpu_custom_call.1} parent=1 // pred_check
      _
    $region95: #{tpu_custom_call.1} parent=1 // pred_check_branch
      %194 = sbr.rel (0) target = $region97
    $region96: #{tpu_custom_call.1} parent=1 // pred_region
      %195 = dma.done [#allocation22], 2048
    $region97: #{tpu_custom_call.1} parent=1 // pred_fallthru
      _
    %196 = sfence
    %s197 = sadd.s32 0, 0
    %s198 = smul.u32 8, %s197
    %s199 = sadd.s32 0, 0
    %s200 = smul.u32 2, %s199
    %p201 = scmp.eq.s32.totalorder 0, 0
    // Predicated region
    $region98: #{tpu_custom_call.1} parent=1 // pred_check
      %p202 = pneg %p201
    $region99: #{tpu_custom_call.1} parent=1 // pred_check_branch
      %204 = sbr.rel (%p202) target = $region101
    $region100: #{tpu_custom_call.1} parent=1 // pred_region
      %v205 = vld [vmem:[#allocation11] sm:$0xff]
      %v206 = vld [vmem:[#allocation11 + $0x8] sm:$0xff]
      %v207 = vld [vmem:[#allocation11 + $0x10] sm:$0xff]
      %v208 = vld [vmem:[#allocation11 + $0x18] sm:$0xff]
      %v209 = vld [vmem:[#allocation11 + $0x20] sm:$0xff]
      %v210 = vld [vmem:[#allocation11 + $0x28] sm:$0xff]
      %v211 = vld [vmem:[#allocation11 + $0x30] sm:$0xff]
      %v212 = vld [vmem:[#allocation11 + $0x38] sm:$0xff]
      %v213 = vld [vmem:[#allocation11 + $0x40] sm:$0xff]
      %v214 = vld [vmem:[#allocation11 + $0x48] sm:$0xff]
      %v215 = vld [vmem:[#allocation11 + $0x50] sm:$0xff]
      %v216 = vld [vmem:[#allocation11 + $0x58] sm:$0xff]
      %v217 = vld [vmem:[#allocation11 + $0x60] sm:$0xff]
      %v218 = vld [vmem:[#allocation11 + $0x68] sm:$0xff]
      %v219 = vld [vmem:[#allocation11 + $0x70] sm:$0xff]
      %v220 = vld [vmem:[#allocation11 + $0x78] sm:$0xff]
      %v221 = vld [vmem:[#allocation11 + $0x80] sm:$0xff]
      %v222 = vld [vmem:[#allocation11 + $0x88] sm:$0xff]
      %v223 = vld [vmem:[#allocation11 + $0x90] sm:$0xff]
      %v224 = vld [vmem:[#allocation11 + $0x98] sm:$0xff]
      %v225 = vld [vmem:[#allocation11 + $0xa0] sm:$0xff]
      %v226 = vld [vmem:[#allocation11 + $0xa8] sm:$0xff]
      %v227 = vld [vmem:[#allocation11 + $0xb0] sm:$0xff]
      %v228 = vld [vmem:[#allocation11 + $0xb8] sm:$0xff]
      %v229 = vld [vmem:[#allocation11 + $0xc0] sm:$0xff]
      %v230 = vld [vmem:[#allocation11 + $0xc8] sm:$0xff]
      %v231 = vld [vmem:[#allocation11 + $0xd0] sm:$0xff]
      %v232 = vld [vmem:[#allocation11 + $0xd8] sm:$0xff]
      %v233 = vld [vmem:[#allocation11 + $0xe0] sm:$0xff]
      %v234 = vld [vmem:[#allocation11 + $0xe8] sm:$0xff]
      %v235 = vld [vmem:[#allocation11 + $0xf0] sm:$0xff]
      %v236 = vld [vmem:[#allocation11 + $0xf8] sm:$0xff]
      %v237 = vld [vmem:[#allocation17] sm:$0xff]
      %v238 = vld [vmem:[#allocation17 + $0x8] sm:$0xff]
      %v239 = vld [vmem:[#allocation17 + $0x10] sm:$0xff]
      %v240 = vld [vmem:[#allocation17 + $0x18] sm:$0xff]
      %v241 = vld [vmem:[#allocation17 + $0x20] sm:$0xff]
      %v242 = vld [vmem:[#allocation17 + $0x28] sm:$0xff]
      %v243 = vld [vmem:[#allocation17 + $0x30] sm:$0xff]
      %v244 = vld [vmem:[#allocation17 + $0x38] sm:$0xff]
      %v245 = vld [vmem:[#allocation17 + $0x40] sm:$0xff]
      %v246 = vld [vmem:[#allocation17 + $0x48] sm:$0xff]
      %v247 = vld [vmem:[#allocation17 + $0x50] sm:$0xff]
      %v248 = vld [vmem:[#allocation17 + $0x58] sm:$0xff]
      %v249 = vld [vmem:[#allocation17 + $0x60] sm:$0xff]
      %v250 = vld [vmem:[#allocation17 + $0x68] sm:$0xff]
      %v251 = vld [vmem:[#allocation17 + $0x70] sm:$0xff]
      %v252 = vld [vmem:[#allocation17 + $0x78] sm:$0xff]
      %s253 = sld [smem:[#allocation4]]
      %v254 = vld [vmem:[#allocation12] sm:$0xff]
      %v255 = vld [vmem:[#allocation12 + $0x8] sm:$0xff]
      %v256 = vld [vmem:[#allocation12 + $0x10] sm:$0xff]
      %v257 = vld [vmem:[#allocation12 + $0x18] sm:$0xff]
      %v258 = vld [vmem:[#allocation12 + $0x20] sm:$0xff]
      %v259 = vld [vmem:[#allocation12 + $0x28] sm:$0xff]
      %v260 = vld [vmem:[#allocation12 + $0x30] sm:$0xff]
      %v261 = vld [vmem:[#allocation12 + $0x38] sm:$0xff]
      %v262 = vld [vmem:[#allocation12 + $0x40] sm:$0xff]
      %v263 = vld [vmem:[#allocation12 + $0x48] sm:$0xff]
      %v264 = vld [vmem:[#allocation12 + $0x50] sm:$0xff]
      %v265 = vld [vmem:[#allocation12 + $0x58] sm:$0xff]
      %v266 = vld [vmem:[#allocation12 + $0x60] sm:$0xff]
      %v267 = vld [vmem:[#allocation12 + $0x68] sm:$0xff]
      %v268 = vld [vmem:[#allocation12 + $0x70] sm:$0xff]
      %v269 = vld [vmem:[#allocation12 + $0x78] sm:$0xff]
      %v270 = vld [vmem:[#allocation12 + $0x80] sm:$0xff]
      %v271 = vld [vmem:[#allocation12 + $0x88] sm:$0xff]
      %v272 = vld [vmem:[#allocation12 + $0x90] sm:$0xff]
      %v273 = vld [vmem:[#allocation12 + $0x98] sm:$0xff]
      %v274 = vld [vmem:[#allocation12 + $0xa0] sm:$0xff]
      %v275 = vld [vmem:[#allocation12 + $0xa8] sm:$0xff]
      %v276 = vld [vmem:[#allocation12 + $0xb0] sm:$0xff]
      %v277 = vld [vmem:[#allocation12 + $0xb8] sm:$0xff]
      %v278 = vld [vmem:[#allocation12 + $0xc0] sm:$0xff]
      %v279 = vld [vmem:[#allocation12 + $0xc8] sm:$0xff]
      %v280 = vld [vmem:[#allocation12 + $0xd0] sm:$0xff]
      %v281 = vld [vmem:[#allocation12 + $0xd8] sm:$0xff]
      %v282 = vld [vmem:[#allocation12 + $0xe0] sm:$0xff]
      %v283 = vld [vmem:[#allocation12 + $0xe8] sm:$0xff]
      %v284 = vld [vmem:[#allocation12 + $0xf0] sm:$0xff]
      %v285 = vld [vmem:[#allocation12 + $0xf8] sm:$0xff]
      %v286 = vstv %s253
      %v287 = vmul.f32 %v286, %v254
      %v288 = vmul.f32 %v286, %v255
      %v289 = vmul.f32 %v286, %v256
      %v290 = vmul.f32 %v286, %v257
      %v291 = vmul.f32 %v286, %v258
      %v292 = vmul.f32 %v286, %v259
      %v293 = vmul.f32 %v286, %v260
      %v294 = vmul.f32 %v286, %v261
      %v295 = vmul.f32 %v286, %v262
      %v296 = vmul.f32 %v286, %v263
      %v297 = vmul.f32 %v286, %v264
      %v298 = vmul.f32 %v286, %v265
      %v299 = vmul.f32 %v286, %v266
      %v300 = vmul.f32 %v286, %v267
      %v301 = vmul.f32 %v286, %v268
      %v302 = vmul.f32 %v286, %v269
      %v303 = vmul.f32 %v286, %v270
      %v304 = vmul.f32 %v286, %v271
      %v305 = vmul.f32 %v286, %v272
      %v306 = vmul.f32 %v286, %v273
      %v307 = vmul.f32 %v286, %v274
      %v308 = vmul.f32 %v286, %v275
      %v309 = vmul.f32 %v286, %v276
      %v310 = vmul.f32 %v286, %v277
      %v311 = vmul.f32 %v286, %v278
      %v312 = vmul.f32 %v286, %v279
      %v313 = vmul.f32 %v286, %v280
      %v314 = vmul.f32 %v286, %v281
      %v315 = vmul.f32 %v286, %v282
      %v316 = vmul.f32 %v286, %v283
      %v317 = vmul.f32 %v286, %v284
      %v318 = vmul.f32 %v286, %v285
      %v319 = vadd.f32 %v205, %v287
      %v320 = vadd.f32 %v206, %v288
      %v321 = vadd.f32 %v207, %v289
      %v322 = vadd.f32 %v208, %v290
      %v323 = vadd.f32 %v209, %v291
      %v324 = vadd.f32 %v210, %v292
      %v325 = vadd.f32 %v211, %v293
      %v326 = vadd.f32 %v212, %v294
      %v327 = vadd.f32 %v213, %v295
      %v328 = vadd.f32 %v214, %v296
      %v329 = vadd.f32 %v215, %v297
      %v330 = vadd.f32 %v216, %v298
      %v331 = vadd.f32 %v217, %v299
      %v332 = vadd.f32 %v218, %v300
      %v333 = vadd.f32 %v219, %v301
      %v334 = vadd.f32 %v220, %v302
      %v335 = vadd.f32 %v221, %v303
      %v336 = vadd.f32 %v222, %v304
      %v337 = vadd.f32 %v223, %v305
      %v338 = vadd.f32 %v224, %v306
      %v339 = vadd.f32 %v225, %v307
      %v340 = vadd.f32 %v226, %v308
      %v341 = vadd.f32 %v227, %v309
      %v342 = vadd.f32 %v228, %v310
      %v343 = vadd.f32 %v229, %v311
      %v344 = vadd.f32 %v230, %v312
      %v345 = vadd.f32 %v231, %v313
      %v346 = vadd.f32 %v232, %v314
      %v347 = vadd.f32 %v233, %v315
      %v348 = vadd.f32 %v234, %v316
      %v349 = vadd.f32 %v235, %v317
      %v350 = vadd.f32 %v236, %v318
      %s351 = sld [smem:[#allocation4 + $0x2]]
      %v352 = vld [vmem:[#allocation18] sm:$0xff]
      %v353 = vld [vmem:[#allocation18 + $0x8] sm:$0xff]
      %v354 = vld [vmem:[#allocation18 + $0x10] sm:$0xff]
      %v355 = vld [vmem:[#allocation18 + $0x18] sm:$0xff]
      %v356 = vld [vmem:[#allocation18 + $0x20] sm:$0xff]
      %v357 = vld [vmem:[#allocation18 + $0x28] sm:$0xff]
      %v358 = vld [vmem:[#allocation18 + $0x30] sm:$0xff]
      %v359 = vld [vmem:[#allocation18 + $0x38] sm:$0xff]
      %v360 = vld [vmem:[#allocation18 + $0x40] sm:$0xff]
      %v361 = vld [vmem:[#allocation18 + $0x48] sm:$0xff]
      %v362 = vld [vmem:[#allocation18 + $0x50] sm:$0xff]
      %v363 = vld [vmem:[#allocation18 + $0x58] sm:$0xff]
      %v364 = vld [vmem:[#allocation18 + $0x60] sm:$0xff]
      %v365 = vld [vmem:[#allocation18 + $0x68] sm:$0xff]
      %v366 = vld [vmem:[#allocation18 + $0x70] sm:$0xff]
      %v367 = vld [vmem:[#allocation18 + $0x78] sm:$0xff]
      %v368 = vstv %s351
      %v369 = vmul.f32 %v368, %v352
      %v370 = vmul.f32 %v368, %v353
      %v371 = vmul.f32 %v368, %v354
      %v372 = vmul.f32 %v368, %v355
      %v373 = vmul.f32 %v368, %v356
      %v374 = vmul.f32 %v368, %v357
      %v375 = vmul.f32 %v368, %v358
      %v376 = vmul.f32 %v368, %v359
      %v377 = vmul.f32 %v368, %v360
      %v378 = vmul.f32 %v368, %v361
      %v379 = vmul.f32 %v368, %v362
      %v380 = vmul.f32 %v368, %v363
      %v381 = vmul.f32 %v368, %v364
      %v382 = vmul.f32 %v368, %v365
      %v383 = vmul.f32 %v368, %v366
      %v384 = vmul.f32 %v368, %v367
      %v385 = vadd.f32 %v237, %v369
      %v386 = vadd.f32 %v238, %v370
      %v387 = vadd.f32 %v239, %v371
      %v388 = vadd.f32 %v240, %v372
      %v389 = vadd.f32 %v241, %v373
      %v390 = vadd.f32 %v242, %v374
      %v391 = vadd.f32 %v243, %v375
      %v392 = vadd.f32 %v244, %v376
      %v393 = vadd.f32 %v245, %v377
      %v394 = vadd.f32 %v246, %v378
      %v395 = vadd.f32 %v247, %v379
      %v396 = vadd.f32 %v248, %v380
      %v397 = vadd.f32 %v249, %v381
      %v398 = vadd.f32 %v250, %v382
      %v399 = vadd.f32 %v251, %v383
      %v400 = vadd.f32 %v252, %v384
      %s401 = sld [smem:[#allocation4 + $0x4]]
      %v402 = vld [vmem:[#allocation14] sm:$0xff]
      %v403 = vld [vmem:[#allocation14 + $0x8] sm:$0xff]
      %v404 = vld [vmem:[#allocation14 + $0x10] sm:$0xff]
      %v405 = vld [vmem:[#allocation14 + $0x18] sm:$0xff]
      %v406 = vld [vmem:[#allocation14 + $0x20] sm:$0xff]
      %v407 = vld [vmem:[#allocation14 + $0x28] sm:$0xff]
      %v408 = vld [vmem:[#allocation14 + $0x30] sm:$0xff]
      %v409 = vld [vmem:[#allocation14 + $0x38] sm:$0xff]
      %v410 = vld [vmem:[#allocation14 + $0x40] sm:$0xff]
      %v411 = vld [vmem:[#allocation14 + $0x48] sm:$0xff]
      %v412 = vld [vmem:[#allocation14 + $0x50] sm:$0xff]
      %v413 = vld [vmem:[#allocation14 + $0x58] sm:$0xff]
      %v414 = vld [vmem:[#allocation14 + $0x60] sm:$0xff]
      %v415 = vld [vmem:[#allocation14 + $0x68] sm:$0xff]
      %v416 = vld [vmem:[#allocation14 + $0x70] sm:$0xff]
      %v417 = vld [vmem:[#allocation14 + $0x78] sm:$0xff]
      %v418 = vld [vmem:[#allocation14 + $0x80] sm:$0xff]
      %v419 = vld [vmem:[#allocation14 + $0x88] sm:$0xff]
      %v420 = vld [vmem:[#allocation14 + $0x90] sm:$0xff]
      %v421 = vld [vmem:[#allocation14 + $0x98] sm:$0xff]
      %v422 = vld [vmem:[#allocation14 + $0xa0] sm:$0xff]
      %v423 = vld [vmem:[#allocation14 + $0xa8] sm:$0xff]
      %v424 = vld [vmem:[#allocation14 + $0xb0] sm:$0xff]
      %v425 = vld [vmem:[#allocation14 + $0xb8] sm:$0xff]
      %v426 = vld [vmem:[#allocation14 + $0xc0] sm:$0xff]
      %v427 = vld [vmem:[#allocation14 + $0xc8] sm:$0xff]
      %v428 = vld [vmem:[#allocation14 + $0xd0] sm:$0xff]
      %v429 = vld [vmem:[#allocation14 + $0xd8] sm:$0xff]
      %v430 = vld [vmem:[#allocation14 + $0xe0] sm:$0xff]
      %v431 = vld [vmem:[#allocation14 + $0xe8] sm:$0xff]
      %v432 = vld [vmem:[#allocation14 + $0xf0] sm:$0xff]
      %v433 = vld [vmem:[#allocation14 + $0xf8] sm:$0xff]
      %v434 = vstv %s401
      %v435 = vmul.f32 %v434, %v402
      %v436 = vmul.f32 %v434, %v403
      %v437 = vmul.f32 %v434, %v404
      %v438 = vmul.f32 %v434, %v405
      %v439 = vmul.f32 %v434, %v406
      %v440 = vmul.f32 %v434, %v407
      %v441 = vmul.f32 %v434, %v408
      %v442 = vmul.f32 %v434, %v409
      %v443 = vmul.f32 %v434, %v410
      %v444 = vmul.f32 %v434, %v411
      %v445 = vmul.f32 %v434, %v412
      %v446 = vmul.f32 %v434, %v413
      %v447 = vmul.f32 %v434, %v414
      %v448 = vmul.f32 %v434, %v415
      %v449 = vmul.f32 %v434, %v416
      %v450 = vmul.f32 %v434, %v417
      %v451 = vmul.f32 %v434, %v418
      %v452 = vmul.f32 %v434, %v419
      %v453 = vmul.f32 %v434, %v420
      %v454 = vmul.f32 %v434, %v421
      %v455 = vmul.f32 %v434, %v422
      %v456 = vmul.f32 %v434, %v423
      %v457 = vmul.f32 %v434, %v424
      %v458 = vmul.f32 %v434, %v425
      %v459 = vmul.f32 %v434, %v426
      %v460 = vmul.f32 %v434, %v427
      %v461 = vmul.f32 %v434, %v428
      %v462 = vmul.f32 %v434, %v429
      %v463 = vmul.f32 %v434, %v430
      %v464 = vmul.f32 %v434, %v431
      %v465 = vmul.f32 %v434, %v432
      %v466 = vmul.f32 %v434, %v433
      %v467 = vadd.f32 %v319, %v435
      %v468 = vadd.f32 %v320, %v436
      %v469 = vadd.f32 %v321, %v437
      %v470 = vadd.f32 %v322, %v438
      %v471 = vadd.f32 %v323, %v439
      %v472 = vadd.f32 %v324, %v440
      %v473 = vadd.f32 %v325, %v441
      %v474 = vadd.f32 %v326, %v442
      %v475 = vadd.f32 %v327, %v443
      %v476 = vadd.f32 %v328, %v444
      %v477 = vadd.f32 %v329, %v445
      %v478 = vadd.f32 %v330, %v446
      %v479 = vadd.f32 %v331, %v447
      %v480 = vadd.f32 %v332, %v448
      %v481 = vadd.f32 %v333, %v449
      %v482 = vadd.f32 %v334, %v450
      %v483 = vadd.f32 %v335, %v451
      %v484 = vadd.f32 %v336, %v452
      %v485 = vadd.f32 %v337, %v453
      %v486 = vadd.f32 %v338, %v454
      %v487 = vadd.f32 %v339, %v455
      %v488 = vadd.f32 %v340, %v456
      %v489 = vadd.f32 %v341, %v457
      %v490 = vadd.f32 %v342, %v458
      %v491 = vadd.f32 %v343, %v459
      %v492 = vadd.f32 %v344, %v460
      %v493 = vadd.f32 %v345, %v461
      %v494 = vadd.f32 %v346, %v462
      %v495 = vadd.f32 %v347, %v463
      %v496 = vadd.f32 %v348, %v464
      %v497 = vadd.f32 %v349, %v465
      %v498 = vadd.f32 %v350, %v466
      %s499 = sld [smem:[#allocation4 + $0x6]]
      %v500 = vld [vmem:[#allocation20] sm:$0xff]
      %v501 = vld [vmem:[#allocation20 + $0x8] sm:$0xff]
      %v502 = vld [vmem:[#allocation20 + $0x10] sm:$0xff]
      %v503 = vld [vmem:[#allocation20 + $0x18] sm:$0xff]
      %v504 = vld [vmem:[#allocation20 + $0x20] sm:$0xff]
      %v505 = vld [vmem:[#allocation20 + $0x28] sm:$0xff]
      %v506 = vld [vmem:[#allocation20 + $0x30] sm:$0xff]
      %v507 = vld [vmem:[#allocation20 + $0x38] sm:$0xff]
      %v508 = vld [vmem:[#allocation20 + $0x40] sm:$0xff]
      %v509 = vld [vmem:[#allocation20 + $0x48] sm:$0xff]
      %v510 = vld [vmem:[#allocation20 + $0x50] sm:$0xff]
      %v511 = vld [vmem:[#allocation20 + $0x58] sm:$0xff]
      %v512 = vld [vmem:[#allocation20 + $0x60] sm:$0xff]
      %v513 = vld [vmem:[#allocation20 + $0x68] sm:$0xff]
      %v514 = vld [vmem:[#allocation20 + $0x70] sm:$0xff]
      %v515 = vld [vmem:[#allocation20 + $0x78] sm:$0xff]
      %v516 = vstv %s499
      %v517 = vmul.f32 %v516, %v500
      %v518 = vmul.f32 %v516, %v501
      %v519 = vmul.f32 %v516, %v502
      %v520 = vmul.f32 %v516, %v503
      %v521 = vmul.f32 %v516, %v504
      %v522 = vmul.f32 %v516, %v505
      %v523 = vmul.f32 %v516, %v506
      %v524 = vmul.f32 %v516, %v507
      %v525 = vmul.f32 %v516, %v508
      %v526 = vmul.f32 %v516, %v509
      %v527 = vmul.f32 %v516, %v510
      %v528 = vmul.f32 %v516, %v511
      %v529 = vmul.f32 %v516, %v512
      %v530 = vmul.f32 %v516, %v513
      %v531 = vmul.f32 %v516, %v514
      %v532 = vmul.f32 %v516, %v515
      %v533 = vadd.f32 %v385, %v517
      %v534 = vadd.f32 %v386, %v518
      %v535 = vadd.f32 %v387, %v519
      %v536 = vadd.f32 %v388, %v520
      %v537 = vadd.f32 %v389, %v521
      %v538 = vadd.f32 %v390, %v522
      %v539 = vadd.f32 %v391, %v523
      %v540 = vadd.f32 %v392, %v524
      %v541 = vadd.f32 %v393, %v525
      %v542 = vadd.f32 %v394, %v526
      %v543 = vadd.f32 %v395, %v527
      %v544 = vadd.f32 %v396, %v528
      %v545 = vadd.f32 %v397, %v529
      %v546 = vadd.f32 %v398, %v530
      %v547 = vadd.f32 %v399, %v531
      %v548 = vadd.f32 %v400, %v532
      %s549 = sld [smem:[#allocation4 + $0x8]]
      %v550 = vld [vmem:[#allocation15] sm:$0xff]
      %v551 = vld [vmem:[#allocation15 + $0x8] sm:$0xff]
      %v552 = vld [vmem:[#allocation15 + $0x10] sm:$0xff]
      %v553 = vld [vmem:[#allocation15 + $0x18] sm:$0xff]
      %v554 = vld [vmem:[#allocation15 + $0x20] sm:$0xff]
      %v555 = vld [vmem:[#allocation15 + $0x28] sm:$0xff]
      %v556 = vld [vmem:[#allocation15 + $0x30] sm:$0xff]
      %v557 = vld [vmem:[#allocation15 + $0x38] sm:$0xff]
      %v558 = vld [vmem:[#allocation15 + $0x40] sm:$0xff]
      %v559 = vld [vmem:[#allocation15 + $0x48] sm:$0xff]
      %v560 = vld [vmem:[#allocation15 + $0x50] sm:$0xff]
      %v561 = vld [vmem:[#allocation15 + $0x58] sm:$0xff]
      %v562 = vld [vmem:[#allocation15 + $0x60] sm:$0xff]
      %v563 = vld [vmem:[#allocation15 + $0x68] sm:$0xff]
      %v564 = vld [vmem:[#allocation15 + $0x70] sm:$0xff]
      %v565 = vld [vmem:[#allocation15 + $0x78] sm:$0xff]
      %v566 = vld [vmem:[#allocation15 + $0x80] sm:$0xff]
      %v567 = vld [vmem:[#allocation15 + $0x88] sm:$0xff]
      %v568 = vld [vmem:[#allocation15 + $0x90] sm:$0xff]
      %v569 = vld [vmem:[#allocation15 + $0x98] sm:$0xff]
      %v570 = vld [vmem:[#allocation15 + $0xa0] sm:$0xff]
      %v571 = vld [vmem:[#allocation15 + $0xa8] sm:$0xff]
      %v572 = vld [vmem:[#allocation15 + $0xb0] sm:$0xff]
      %v573 = vld [vmem:[#allocation15 + $0xb8] sm:$0xff]
      %v574 = vld [vmem:[#allocation15 + $0xc0] sm:$0xff]
      %v575 = vld [vmem:[#allocation15 + $0xc8] sm:$0xff]
      %v576 = vld [vmem:[#allocation15 + $0xd0] sm:$0xff]
      %v577 = vld [vmem:[#allocation15 + $0xd8] sm:$0xff]
      %v578 = vld [vmem:[#allocation15 + $0xe0] sm:$0xff]
      %v579 = vld [vmem:[#allocation15 + $0xe8] sm:$0xff]
      %v580 = vld [vmem:[#allocation15 + $0xf0] sm:$0xff]
      %v581 = vld [vmem:[#allocation15 + $0xf8] sm:$0xff]
      %v582 = vstv %s549
      %v583 = vmul.f32 %v582, %v550
      %v584 = vmul.f32 %v582, %v551
      %v585 = vmul.f32 %v582, %v552
      %v586 = vmul.f32 %v582, %v553
      %v587 = vmul.f32 %v582, %v554
      %v588 = vmul.f32 %v582, %v555
      %v589 = vmul.f32 %v582, %v556
      %v590 = vmul.f32 %v582, %v557
      %v591 = vmul.f32 %v582, %v558
      %v592 = vmul.f32 %v582, %v559
      %v593 = vmul.f32 %v582, %v560
      %v594 = vmul.f32 %v582, %v561
      %v595 = vmul.f32 %v582, %v562
      %v596 = vmul.f32 %v582, %v563
      %v597 = vmul.f32 %v582, %v564
      %v598 = vmul.f32 %v582, %v565
      %v599 = vmul.f32 %v582, %v566
      %v600 = vmul.f32 %v582, %v567
      %v601 = vmul.f32 %v582, %v568
      %v602 = vmul.f32 %v582, %v569
      %v603 = vmul.f32 %v582, %v570
      %v604 = vmul.f32 %v582, %v571
      %v605 = vmul.f32 %v582, %v572
      %v606 = vmul.f32 %v582, %v573
      %v607 = vmul.f32 %v582, %v574
      %v608 = vmul.f32 %v582, %v575
      %v609 = vmul.f32 %v582, %v576
      %v610 = vmul.f32 %v582, %v577
      %v611 = vmul.f32 %v582, %v578
      %v612 = vmul.f32 %v582, %v579
      %v613 = vmul.f32 %v582, %v580
      %v614 = vmul.f32 %v582, %v581
      %v615 = vadd.f32 %v467, %v583
      %v616 = vadd.f32 %v468, %v584
      %v617 = vadd.f32 %v469, %v585
      %v618 = vadd.f32 %v470, %v586
      %v619 = vadd.f32 %v471, %v587
      %v620 = vadd.f32 %v472, %v588
      %v621 = vadd.f32 %v473, %v589
      %v622 = vadd.f32 %v474, %v590
      %v623 = vadd.f32 %v475, %v591
      %v624 = vadd.f32 %v476, %v592
      %v625 = vadd.f32 %v477, %v593
      %v626 = vadd.f32 %v478, %v594
      %v627 = vadd.f32 %v479, %v595
      %v628 = vadd.f32 %v480, %v596
      %v629 = vadd.f32 %v481, %v597
      %v630 = vadd.f32 %v482, %v598
      %v631 = vadd.f32 %v483, %v599
      %v632 = vadd.f32 %v484, %v600
      %v633 = vadd.f32 %v485, %v601
      %v634 = vadd.f32 %v486, %v602
      %v635 = vadd.f32 %v487, %v603
      %v636 = vadd.f32 %v488, %v604
      %v637 = vadd.f32 %v489, %v605
      %v638 = vadd.f32 %v490, %v606
      %v639 = vadd.f32 %v491, %v607
      %v640 = vadd.f32 %v492, %v608
      %v641 = vadd.f32 %v493, %v609
      %v642 = vadd.f32 %v494, %v610
      %v643 = vadd.f32 %v495, %v611
      %v644 = vadd.f32 %v496, %v612
      %v645 = vadd.f32 %v497, %v613
      %v646 = vadd.f32 %v498, %v614
      %s647 = sld [smem:[#allocation4 + $0xa]]
      %v648 = vld [vmem:[#allocation21] sm:$0xff]
      %v649 = vld [vmem:[#allocation21 + $0x8] sm:$0xff]
      %v650 = vld [vmem:[#allocation21 + $0x10] sm:$0xff]
      %v651 = vld [vmem:[#allocation21 + $0x18] sm:$0xff]
      %v652 = vld [vmem:[#allocation21 + $0x20] sm:$0xff]
      %v653 = vld [vmem:[#allocation21 + $0x28] sm:$0xff]
      %v654 = vld [vmem:[#allocation21 + $0x30] sm:$0xff]
      %v655 = vld [vmem:[#allocation21 + $0x38] sm:$0xff]
      %v656 = vld [vmem:[#allocation21 + $0x40] sm:$0xff]
      %v657 = vld [vmem:[#allocation21 + $0x48] sm:$0xff]
      %v658 = vld [vmem:[#allocation21 + $0x50] sm:$0xff]
      %v659 = vld [vmem:[#allocation21 + $0x58] sm:$0xff]
      %v660 = vld [vmem:[#allocation21 + $0x60] sm:$0xff]
      %v661 = vld [vmem:[#allocation21 + $0x68] sm:$0xff]
      %v662 = vld [vmem:[#allocation21 + $0x70] sm:$0xff]
      %v663 = vld [vmem:[#allocation21 + $0x78] sm:$0xff]
      %v664 = vstv %s647
      %v665 = vmul.f32 %v664, %v648
      %v666 = vmul.f32 %v664, %v649
      %v667 = vmul.f32 %v664, %v650
      %v668 = vmul.f32 %v664, %v651
      %v669 = vmul.f32 %v664, %v652
      %v670 = vmul.f32 %v664, %v653
      %v671 = vmul.f32 %v664, %v654
      %v672 = vmul.f32 %v664, %v655
      %v673 = vmul.f32 %v664, %v656
      %v674 = vmul.f32 %v664, %v657
      %v675 = vmul.f32 %v664, %v658
      %v676 = vmul.f32 %v664, %v659
      %v677 = vmul.f32 %v664, %v660
      %v678 = vmul.f32 %v664, %v661
      %v679 = vmul.f32 %v664, %v662
      %v680 = vmul.f32 %v664, %v663
      %v681 = vadd.f32 %v533, %v665
      %v682 = vadd.f32 %v534, %v666
      %v683 = vadd.f32 %v535, %v667
      %v684 = vadd.f32 %v536, %v668
      %v685 = vadd.f32 %v537, %v669
      %v686 = vadd.f32 %v538, %v670
      %v687 = vadd.f32 %v539, %v671
      %v688 = vadd.f32 %v540, %v672
      %v689 = vadd.f32 %v541, %v673
      %v690 = vadd.f32 %v542, %v674
      %v691 = vadd.f32 %v543, %v675
      %v692 = vadd.f32 %v544, %v676
      %v693 = vadd.f32 %v545, %v677
      %v694 = vadd.f32 %v546, %v678
      %v695 = vadd.f32 %v547, %v679
      %v696 = vadd.f32 %v548, %v680
      %697 = vst [vmem:[#allocation2] sm:$0xff] %v615
      %698 = vst [vmem:[#allocation2 + $0x8] sm:$0xff] %v616
      %699 = vst [vmem:[#allocation2 + $0x10] sm:$0xff] %v617
      %700 = vst [vmem:[#allocation2 + $0x18] sm:$0xff] %v618
      %701 = vst [vmem:[#allocation2 + $0x20] sm:$0xff] %v619
      %702 = vst [vmem:[#allocation2 + $0x28] sm:$0xff] %v620
      %703 = vst [vmem:[#allocation2 + $0x30] sm:$0xff] %v621
      %704 = vst [vmem:[#allocation2 + $0x38] sm:$0xff] %v622
      %705 = vst [vmem:[#allocation2 + $0x40] sm:$0xff] %v623
      %706 = vst [vmem:[#allocation2 + $0x48] sm:$0xff] %v624
      %707 = vst [vmem:[#allocation2 + $0x50] sm:$0xff] %v625
      %708 = vst [vmem:[#allocation2 + $0x58] sm:$0xff] %v626
      %709 = vst [vmem:[#allocation2 + $0x60] sm:$0xff] %v627
      %710 = vst [vmem:[#allocation2 + $0x68] sm:$0xff] %v628
      %711 = vst [vmem:[#allocation2 + $0x70] sm:$0xff] %v629
      %712 = vst [vmem:[#allocation2 + $0x78] sm:$0xff] %v630
      %713 = vst [vmem:[#allocation2 + $0x80] sm:$0xff] %v631
      %714 = vst [vmem:[#allocation2 + $0x88] sm:$0xff] %v632
      %715 = vst [vmem:[#allocation2 + $0x90] sm:$0xff] %v633
      %716 = vst [vmem:[#allocation2 + $0x98] sm:$0xff] %v634
      %717 = vst [vmem:[#allocation2 + $0xa0] sm:$0xff] %v635
      %718 = vst [vmem:[#allocation2 + $0xa8] sm:$0xff] %v636
      %719 = vst [vmem:[#allocation2 + $0xb0] sm:$0xff] %v637
      %720 = vst [vmem:[#allocation2 + $0xb8] sm:$0xff] %v638
      %721 = vst [vmem:[#allocation2 + $0xc0] sm:$0xff] %v639
      %722 = vst [vmem:[#allocation2 + $0xc8] sm:$0xff] %v640
      %723 = vst [vmem:[#allocation2 + $0xd0] sm:$0xff] %v641
      %724 = vst [vmem:[#allocation2 + $0xd8] sm:$0xff] %v642
      %725 = vst [vmem:[#allocation2 + $0xe0] sm:$0xff] %v643
      %726 = vst [vmem:[#allocation2 + $0xe8] sm:$0xff] %v644
      %727 = vst [vmem:[#allocation2 + $0xf0] sm:$0xff] %v645
      %728 = vst [vmem:[#allocation2 + $0xf8] sm:$0xff] %v646
      %729 = vst [vmem:[#allocation3] sm:$0xff] %v681
      %730 = vst [vmem:[#allocation3 + $0x8] sm:$0xff] %v682
      %731 = vst [vmem:[#allocation3 + $0x10] sm:$0xff] %v683
      %732 = vst [vmem:[#allocation3 + $0x18] sm:$0xff] %v684
      %733 = vst [vmem:[#allocation3 + $0x20] sm:$0xff] %v685
      %734 = vst [vmem:[#allocation3 + $0x28] sm:$0xff] %v686
      %735 = vst [vmem:[#allocation3 + $0x30] sm:$0xff] %v687
      %736 = vst [vmem:[#allocation3 + $0x38] sm:$0xff] %v688
      %737 = vst [vmem:[#allocation3 + $0x40] sm:$0xff] %v689
      %738 = vst [vmem:[#allocation3 + $0x48] sm:$0xff] %v690
      %739 = vst [vmem:[#allocation3 + $0x50] sm:$0xff] %v691
      %740 = vst [vmem:[#allocation3 + $0x58] sm:$0xff] %v692
      %741 = vst [vmem:[#allocation3 + $0x60] sm:$0xff] %v693
      %742 = vst [vmem:[#allocation3 + $0x68] sm:$0xff] %v694
      %743 = vst [vmem:[#allocation3 + $0x70] sm:$0xff] %v695
      %744 = vst [vmem:[#allocation3 + $0x78] sm:$0xff] %v696
    $region101: #{tpu_custom_call.1} parent=1 // pred_fallthru
      _
    %v745 = vld [vmem:[#allocation8] sm:$0xff]
    %v746 = vld [vmem:[#allocation8 + $0x8] sm:$0xff]
    %v747 = vld [vmem:[#allocation8 + $0x10] sm:$0xff]
    %v748 = vld [vmem:[#allocation8 + $0x18] sm:$0xff]
    %v749 = vld [vmem:[#allocation8 + $0x20] sm:$0xff]
    %v750 = vld [vmem:[#allocation8 + $0x28] sm:$0xff]
    %v751 = vld [vmem:[#allocation8 + $0x30] sm:$0xff]
    %v752 = vld [vmem:[#allocation8 + $0x38] sm:$0xff]
    %v753 = vld [vmem:[#allocation8 + $0x40] sm:$0xff]
    %v754 = vld [vmem:[#allocation8 + $0x48] sm:$0xff]
    %v755 = vld [vmem:[#allocation8 + $0x50] sm:$0xff]
    %v756 = vld [vmem:[#allocation8 + $0x58] sm:$0xff]
    %v757 = vld [vmem:[#allocation8 + $0x60] sm:$0xff]
    %v758 = vld [vmem:[#allocation8 + $0x68] sm:$0xff]
    %v759 = vld [vmem:[#allocation8 + $0x70] sm:$0xff]
    %v760 = vld [vmem:[#allocation8 + $0x78] sm:$0xff]
    %v761 = vld [vmem:[#allocation2] sm:$0xff]
    %v762 = vld [vmem:[#allocation2 + $0x8] sm:$0xff]
    %v763 = vld [vmem:[#allocation2 + $0x10] sm:$0xff]
    %v764 = vld [vmem:[#allocation2 + $0x18] sm:$0xff]
    %v765 = vld [vmem:[#allocation2 + $0x20] sm:$0xff]
    %v766 = vld [vmem:[#allocation2 + $0x28] sm:$0xff]
    %v767 = vld [vmem:[#allocation2 + $0x30] sm:$0xff]
    %v768 = vld [vmem:[#allocation2 + $0x38] sm:$0xff]
    %v769 = vld [vmem:[#allocation2 + $0x40] sm:$0xff]
    %v770 = vld [vmem:[#allocation2 + $0x48] sm:$0xff]
    %v771 = vld [vmem:[#allocation2 + $0x50] sm:$0xff]
    %v772 = vld [vmem:[#allocation2 + $0x58] sm:$0xff]
    %v773 = vld [vmem:[#allocation2 + $0x60] sm:$0xff]
    %v774 = vld [vmem:[#allocation2 + $0x68] sm:$0xff]
    %v775 = vld [vmem:[#allocation2 + $0x70] sm:$0xff]
    %v776 = vld [vmem:[#allocation2 + $0x78] sm:$0xff]
    %v777 = vld [vmem:[#allocation2 + $0x80] sm:$0xff]
    %v778 = vld [vmem:[#allocation2 + $0x88] sm:$0xff]
    %v779 = vld [vmem:[#allocation2 + $0x90] sm:$0xff]
    %v780 = vld [vmem:[#allocation2 + $0x98] sm:$0xff]
    %v781 = vld [vmem:[#allocation2 + $0xa0] sm:$0xff]
    %v782 = vld [vmem:[#allocation2 + $0xa8] sm:$0xff]
    %v783 = vld [vmem:[#allocation2 + $0xb0] sm:$0xff]
    %v784 = vld [vmem:[#allocation2 + $0xb8] sm:$0xff]
    %v785 = vld [vmem:[#allocation2 + $0xc0] sm:$0xff]
    %v786 = vld [vmem:[#allocation2 + $0xc8] sm:$0xff]
    %v787 = vld [vmem:[#allocation2 + $0xd0] sm:$0xff]
    %v788 = vld [vmem:[#allocation2 + $0xd8] sm:$0xff]
    %v789 = vld [vmem:[#allocation2 + $0xe0] sm:$0xff]
    %v790 = vld [vmem:[#allocation2 + $0xe8] sm:$0xff]
    %v791 = vld [vmem:[#allocation2 + $0xf0] sm:$0xff]
    %v792 = vld [vmem:[#allocation2 + $0xf8] sm:$0xff]
    %v793 = vld [vmem:[%s7] sm:$0x1]
    %v795 = vlaneseq
    %v796 = vshrl.u32 %v795, 7
    %v797 = vsub.s32 0, %v796
    %v798 = vrot.slane %v793, %v797
    %800 = vmatprep.subr.mxu0 0.0
    %801 = vmatpush1.msra.mxu0 %v776
    %802 = vmatprep.subr.mxu0 0.0
    %803 = vmatpush1.msra.mxu0 %v775
    %804 = vmatprep.subr.mxu0 0.0
    %805 = vmatpush1.msra.mxu0 %v774
    %806 = vmatprep.subr.mxu0 0.0
    %807 = vmatpush1.msra.mxu0 %v773
    %808 = vmatprep.subr.mxu0 0.0
    %809 = vmatpush1.msra.mxu0 %v772
    %810 = vmatprep.subr.mxu0 0.0
    %811 = vmatpush1.msra.mxu0 %v771
    %812 = vmatprep.subr.mxu0 0.0
    %813 = vmatpush1.msra.mxu0 %v770
    %814 = vmatprep.subr.mxu0 0.0
    %815 = vmatpush1.msra.mxu0 %v769
    %816 = vmatprep.subr.mxu0 0.0
    %817 = vmatpush1.msra.mxu0 %v768
    %818 = vmatprep.subr.mxu0 0.0
    %819 = vmatpush1.msra.mxu0 %v767
    %820 = vmatprep.subr.mxu0 0.0
    %821 = vmatpush1.msra.mxu0 %v766
    %822 = vmatprep.subr.mxu0 0.0
    %823 = vmatpush1.msra.mxu0 %v765
    %824 = vmatprep.subr.mxu0 0.0
    %825 = vmatpush1.msra.mxu0 %v764
    %826 = vmatprep.subr.mxu0 0.0
    %827 = vmatpush1.msra.mxu0 %v763
    %828 = vmatprep.subr.mxu0 0.0
    %829 = vmatpush1.msra.mxu0 %v762
    %830 = vmatprep.subr.mxu0 0.0
    %831 = vmatpush1.msra.mxu0 %v761
    %832 = vmatprep.subr.mxu0 0.0
    %833 = vmatpush2.msra.mxu0 %v792
    %834 = vmatprep.subr.mxu0 0.0
    %835 = vmatpush2.msra.mxu0 %v791
    %836 = vmatprep.subr.mxu0 0.0
    %837 = vmatpush2.msra.mxu0 %v790
    %838 = vmatprep.subr.mxu0 0.0
    %839 = vmatpush2.msra.mxu0 %v789
    %840 = vmatprep.subr.mxu0 0.0
    %841 = vmatpush2.msra.mxu0 %v788
    %842 = vmatprep.subr.mxu0 0.0
    %843 = vmatpush2.msra.mxu0 %v787
    %844 = vmatprep.subr.mxu0 0.0
    %845 = vmatpush2.msra.mxu0 %v786
    %846 = vmatprep.subr.mxu0 0.0
    %847 = vmatpush2.msra.mxu0 %v785
    %848 = vmatprep.subr.mxu0 0.0
    %849 = vmatpush2.msra.mxu0 %v784
    %850 = vmatprep.subr.mxu0 0.0
    %851 = vmatpush2.msra.mxu0 %v783
    %852 = vmatprep.subr.mxu0 0.0
    %853 = vmatpush2.msra.mxu0 %v782
    %854 = vmatprep.subr.mxu0 0.0
    %855 = vmatpush2.msra.mxu0 %v781
    %856 = vmatprep.subr.mxu0 0.0
    %857 = vmatpush2.msra.mxu0 %v780
    %858 = vmatprep.subr.mxu0 0.0
    %859 = vmatpush2.msra.mxu0 %v779
    %860 = vmatprep.subr.mxu0 0.0
    %861 = vmatpush2.msra.mxu0 %v778
    %862 = vmatprep.subr.mxu0 0.0
    %863 = vmatpush2.msra.mxu0 %v777
    %864 = vmatprep.mubr.f32.mxu0 %v746
    %865 = vmatmul.mubr.f32.gmra.mxu0 %v745
    %v866 = vpop.f32.mrf.mxu0
    %v867 = vadd.f32 %v798, %v866
    %v868 = vpop.f32.mrf.mxu0
    %869 = vmatprep.mubr.f32.mxu0 %v748
    %870 = vmatmul.mubr.f32.gmra.mxu0 %v747
    %v871 = vpop.f32.mrf.mxu0
    %v872 = vadd.f32 %v798, %v871
    %v873 = vpop.f32.mrf.mxu0
    %874 = vmatprep.mubr.f32.mxu0 %v750
    %875 = vmatmul.mubr.f32.gmra.mxu0 %v749
    %v876 = vpop.f32.mrf.mxu0
    %v877 = vadd.f32 %v798, %v876
    %v878 = vpop.f32.mrf.mxu0
    %879 = vmatprep.mubr.f32.mxu0 %v752
    %880 = vmatmul.mubr.f32.gmra.mxu0 %v751
    %v881 = vpop.f32.mrf.mxu0
    %v882 = vadd.f32 %v798, %v881
    %v883 = vpop.f32.mrf.mxu0
    %884 = vmatprep.mubr.f32.mxu0 %v754
    %885 = vmatmul.mubr.f32.gmra.mxu0 %v753
    %v886 = vpop.f32.mrf.mxu0
    %v887 = vadd.f32 %v798, %v886
    %v888 = vpop.f32.mrf.mxu0
    %889 = vmatprep.mubr.f32.mxu0 %v756
    %890 = vmatmul.mubr.f32.gmra.mxu0 %v755
    %v891 = vpop.f32.mrf.mxu0
    %v892 = vadd.f32 %v798, %v891
    %v893 = vpop.f32.mrf.mxu0
    %894 = vmatprep.mubr.f32.mxu0 %v758
    %895 = vmatmul.mubr.f32.gmra.mxu0 %v757
    %v896 = vpop.f32.mrf.mxu0
    %v897 = vadd.f32 %v798, %v896
    %v898 = vpop.f32.mrf.mxu0
    %899 = vmatprep.mubr.f32.mxu0 %v760
    %900 = vmatmul.mubr.f32.gmra.mxu0 %v759
    %v901 = vpop.f32.mrf.mxu0
    %v902 = vadd.f32 %v798, %v901
    %v903 = vpop.f32.mrf.mxu0
    %904 = vdwg.mxu0
    %v905 = vmax.f32 %v867, 0.0
    %v906 = vmax.f32 %v872, 0.0
    %v907 = vmax.f32 %v877, 0.0
    %v908 = vmax.f32 %v882, 0.0
    %v909 = vmax.f32 %v887, 0.0
    %v910 = vmax.f32 %v892, 0.0
    %v911 = vmax.f32 %v897, 0.0
    %v912 = vmax.f32 %v902, 0.0
    %v913 = vld [vmem:[#allocation9] sm:$0xff]
    %v914 = vld [vmem:[#allocation9 + $0x8] sm:$0xff]
    %vm915 = vcmask 523264
    %v917 = vsel %vm915, %v913, 0
    %v920 = vsel %vm915, %v914, 0
    %922 = vmatprep.subr.mxu0 0.0
    %923 = vmatpush1.msra.mxu0 0.0
    %924 = vmatprep.subr.mxu0 0.0
    %925 = vmatpush1.msra.mxu0 0.0
    %926 = vmatprep.subr.mxu0 0.0
    %927 = vmatpush1.msra.mxu0 0.0
    %928 = vmatprep.subr.mxu0 0.0
    %929 = vmatpush1.msra.mxu0 0.0
    %930 = vmatprep.subr.mxu0 0.0
    %931 = vmatpush1.msra.mxu0 0.0
    %932 = vmatprep.subr.mxu0 0.0
    %933 = vmatpush1.msra.mxu0 0.0
    %934 = vmatprep.subr.mxu0 0.0
    %935 = vmatpush1.msra.mxu0 0.0
    %936 = vmatprep.subr.mxu0 0.0
    %937 = vmatpush1.msra.mxu0 0.0
    %938 = vmatprep.subr.mxu0 0.0
    %939 = vmatpush1.msra.mxu0 %v912
    %940 = vmatprep.subr.mxu0 0.0
    %941 = vmatpush1.msra.mxu0 %v911
    %942 = vmatprep.subr.mxu0 0.0
    %943 = vmatpush1.msra.mxu0 %v910
    %944 = vmatprep.subr.mxu0 0.0
    %945 = vmatpush1.msra.mxu0 %v909
    %946 = vmatprep.subr.mxu0 0.0
    %947 = vmatpush1.msra.mxu0 %v908
    %948 = vmatprep.subr.mxu0 0.0
    %949 = vmatpush1.msra.mxu0 %v907
    %950 = vmatprep.subr.mxu0 0.0
    %951 = vmatpush1.msra.mxu0 %v906
    %952 = vmatprep.subr.mxu0 0.0
    %953 = vmatpush1.msra.mxu0 %v905
    %954 = vmatprep.subr.mxu0 0.0
    %955 = vmatpush2.msra.mxu0 0.0
    %956 = vmatprep.subr.mxu0 0.0
    %957 = vmatpush2.msra.mxu0 0.0
    %958 = vmatprep.subr.mxu0 0.0
    %959 = vmatpush2.msra.mxu0 0.0
    %960 = vmatprep.subr.mxu0 0.0
    %961 = vmatpush2.msra.mxu0 0.0
    %962 = vmatprep.subr.mxu0 0.0
    %963 = vmatpush2.msra.mxu0 0.0
    %964 = vmatprep.subr.mxu0 0.0
    %965 = vmatpush2.msra.mxu0 0.0
    %966 = vmatprep.subr.mxu0 0.0
    %967 = vmatpush2.msra.mxu0 0.0
    %968 = vmatprep.subr.mxu0 0.0
    %969 = vmatpush2.msra.mxu0 0.0
    %970 = vmatprep.subr.mxu0 0.0
    %971 = vmatpush2.msra.mxu0 0.0
    %972 = vmatprep.subr.mxu0 0.0
    %973 = vmatpush2.msra.mxu0 0.0
    %974 = vmatprep.subr.mxu0 0.0
    %975 = vmatpush2.msra.mxu0 0.0
    %976 = vmatprep.subr.mxu0 0.0
    %977 = vmatpush2.msra.mxu0 0.0
    %978 = vmatprep.subr.mxu0 0.0
    %979 = vmatpush2.msra.mxu0 0.0
    %980 = vmatprep.subr.mxu0 0.0
    %981 = vmatpush2.msra.mxu0 0.0
    %982 = vmatprep.subr.mxu0 0.0
    %983 = vmatpush2.msra.mxu0 0.0
    %984 = vmatprep.subr.mxu0 0.0
    %985 = vmatpush2.msra.mxu0 0.0
    %986 = vmatprep.mubr.f32.mxu0 0.0
    %987 = vmatmul.mubr.f32.gmra.mxu0 %v917
    %v988 = vpop.f32.mrf.mxu0
    %v989 = vadd.f32 0.0, %v988
    %v990 = vpop.f32.mrf.mxu0
    %991 = vmatprep.mubr.f32.mxu0 0.0
    %992 = vmatmul.mubr.f32.gmra.mxu0 %v920
    %v993 = vpop.f32.mrf.mxu0
    %v994 = vadd.f32 0.0, %v993
    %v995 = vpop.f32.mrf.mxu0
    %996 = vdwg.mxu0
    %v997 = vld [vmem:[#allocation3] sm:$0xff]
    %v998 = vld [vmem:[#allocation3 + $0x8] sm:$0xff]
    %v999 = vld [vmem:[#allocation3 + $0x10] sm:$0xff]
    %v1000 = vld [vmem:[#allocation3 + $0x18] sm:$0xff]
    %v1001 = vld [vmem:[#allocation3 + $0x20] sm:$0xff]
    %v1002 = vld [vmem:[#allocation3 + $0x28] sm:$0xff]
    %v1003 = vld [vmem:[#allocation3 + $0x30] sm:$0xff]
    %v1004 = vld [vmem:[#allocation3 + $0x38] sm:$0xff]
    %v1005 = vld [vmem:[#allocation3 + $0x40] sm:$0xff]
    %v1006 = vld [vmem:[#allocation3 + $0x48] sm:$0xff]
    %v1007 = vld [vmem:[#allocation3 + $0x50] sm:$0xff]
    %v1008 = vld [vmem:[#allocation3 + $0x58] sm:$0xff]
    %v1009 = vld [vmem:[#allocation3 + $0x60] sm:$0xff]
    %v1010 = vld [vmem:[#allocation3 + $0x68] sm:$0xff]
    %v1011 = vld [vmem:[#allocation3 + $0x70] sm:$0xff]
    %v1012 = vld [vmem:[#allocation3 + $0x78] sm:$0xff]
    %v1013 = vld [vmem:[%s12] sm:$0x1]
    %v1015 = vlaneseq
    %v1016 = vshrl.u32 %v1015, 7
    %v1017 = vsub.s32 0, %v1016
    %v1018 = vrot.slane %v1013, %v1017
    %1020 = vmatprep.subr.mxu0 0.0
    %1021 = vmatpush1.msra.mxu0 %v1012
    %1022 = vmatprep.subr.mxu0 0.0
    %1023 = vmatpush1.msra.mxu0 %v1011
    %1024 = vmatprep.subr.mxu0 0.0
    %1025 = vmatpush1.msra.mxu0 %v1010
    %1026 = vmatprep.subr.mxu0 0.0
    %1027 = vmatpush1.msra.mxu0 %v1009
    %1028 = vmatprep.subr.mxu0 0.0
    %1029 = vmatpush1.msra.mxu0 %v1008
    %1030 = vmatprep.subr.mxu0 0.0
    %1031 = vmatpush1.msra.mxu0 %v1007
    %1032 = vmatprep.subr.mxu0 0.0
    %1033 = vmatpush1.msra.mxu0 %v1006
    %1034 = vmatprep.subr.mxu0 0.0
    %1035 = vmatpush1.msra.mxu0 %v1005
    %1036 = vmatprep.subr.mxu0 0.0
    %1037 = vmatpush1.msra.mxu0 %v1004
    %1038 = vmatprep.subr.mxu0 0.0
    %1039 = vmatpush1.msra.mxu0 %v1003
    %1040 = vmatprep.subr.mxu0 0.0
    %1041 = vmatpush1.msra.mxu0 %v1002
    %1042 = vmatprep.subr.mxu0 0.0
    %1043 = vmatpush1.msra.mxu0 %v1001
    %1044 = vmatprep.subr.mxu0 0.0
    %1045 = vmatpush1.msra.mxu0 %v1000
    %1046 = vmatprep.subr.mxu0 0.0
    %1047 = vmatpush1.msra.mxu0 %v999
    %1048 = vmatprep.subr.mxu0 0.0
    %1049 = vmatpush1.msra.mxu0 %v998
    %1050 = vmatprep.subr.mxu0 0.0
    %1051 = vmatpush1.msra.mxu0 %v997
    %1052 = vmatprep.subr.mxu0 0.0
    %1053 = vmatpush2.msra.mxu0 0.0
    %1054 = vmatprep.subr.mxu0 0.0
    %1055 = vmatpush2.msra.mxu0 0.0
    %1056 = vmatprep.subr.mxu0 0.0
    %1057 = vmatpush2.msra.mxu0 0.0
    %1058 = vmatprep.subr.mxu0 0.0
    %1059 = vmatpush2.msra.mxu0 0.0
    %1060 = vmatprep.subr.mxu0 0.0
    %1061 = vmatpush2.msra.mxu0 0.0
    %1062 = vmatprep.subr.mxu0 0.0
    %1063 = vmatpush2.msra.mxu0 0.0
    %1064 = vmatprep.subr.mxu0 0.0
    %1065 = vmatpush2.msra.mxu0 0.0
    %1066 = vmatprep.subr.mxu0 0.0
    %1067 = vmatpush2.msra.mxu0 0.0
    %1068 = vmatprep.subr.mxu0 0.0
    %1069 = vmatpush2.msra.mxu0 0.0
    %1070 = vmatprep.subr.mxu0 0.0
    %1071 = vmatpush2.msra.mxu0 0.0
    %1072 = vmatprep.subr.mxu0 0.0
    %1073 = vmatpush2.msra.mxu0 0.0
    %1074 = vmatprep.subr.mxu0 0.0
    %1075 = vmatpush2.msra.mxu0 0.0
    %1076 = vmatprep.subr.mxu0 0.0
    %1077 = vmatpush2.msra.mxu0 0.0
    %1078 = vmatprep.subr.mxu0 0.0
    %1079 = vmatpush2.msra.mxu0 0.0
    %1080 = vmatprep.subr.mxu0 0.0
    %1081 = vmatpush2.msra.mxu0 0.0
    %1082 = vmatprep.subr.mxu0 0.0
    %1083 = vmatpush2.msra.mxu0 0.0
    %1084 = vmatprep.mubr.f32.mxu0 0.0
    %1085 = vmatmul.mubr.f32.gmra.mxu0 %v989
    %v1086 = vpop.f32.mrf.mxu0
    %v1087 = vadd.f32 %v1018, %v1086
    %v1088 = vpop.f32.mrf.mxu0
    %1089 = vmatprep.mubr.f32.mxu0 0.0
    %1090 = vmatmul.mubr.f32.gmra.mxu0 %v994
    %v1091 = vpop.f32.mrf.mxu0
    %v1092 = vadd.f32 %v1018, %v1091
    %v1093 = vpop.f32.mrf.mxu0
    %1094 = vdwg.mxu0
    %1095 = vst [vmem:[#allocation23] sm:$0xff] %v1087
    %1096 = vst [vmem:[#allocation23 + $0x8] sm:$0xff] %v1092
    // Predicated region
    $region102: #{tpu_custom_call.1} parent=1 // pred_check
      _
    $region103: #{tpu_custom_call.1} parent=1 // pred_check_branch
      %1098 = sbr.rel (0) target = $region105
    $region104: #{tpu_custom_call.1} parent=1 // pred_region
      %s1099 = sadd.s32 0, 0
      %s1100 = smul.u32 2, %s1099
      %s1102 = ssub.s32 256, 256
      %1103 = vsyncadd [#allocation6], %s1102
      %s1104 = smul.addr %s1100, 128
      %s1105 = scalar_lea.hbm %s13, %s1104
      %s1106 = sshll.u32 [#allocation23], 4
      %s1107 = int_to_ptr.vmem [resolvable:$true] %s1106
      %1112 = dma.vmem_to_hbm [thread:$0]  %s1107, 256, %s1105, [#allocation6], 128, 128, 8
    $region105: #{tpu_custom_call.1} parent=1 // pred_fallthru
      _
    // Predicated region
    $region106: #{tpu_custom_call.1} parent=1 // pred_check
      _
    $region107: #{tpu_custom_call.1} parent=1 // pred_check_branch
      %1114 = sbr.rel (0) target = $region109
    $region108: #{tpu_custom_call.1} parent=1 // pred_region
      %1115 = dma.done [#allocation6], 256
    $region109: #{tpu_custom_call.1} parent=1 // pred_fallthru
      _
    %1116 = vsyncpa [#allocation5], 1
    %1117 = vsyncpa [#allocation10], 1
    %1118 = vsyncpa [#allocation13], 1
    %1119 = vsyncpa [#allocation16], 1
    %1120 = vsyncpa [#allocation19], 1
    %1121 = vsyncpa [#allocation22], 1
    %1122 = vsyncpa [#allocation6], 1
    %1123 = vsyncpa [#allocation7], 1

</llo_original>
